<compile_context>
chip_gen: v7x
topology: tpu7x:2x2x1
jax: 0.10.0
libtpu: 0.0.40
codegen_flags: <defaults>
</compile_context>

<pallas_src>
import functools

import jax
import jax.numpy as jnp
from jax.experimental import pallas as pl
from jax.experimental.pallas import tpu as pltpu


def bottleneck_kernel(
    x_ref,                      # (1, TH, W, Cin)   center rows of the input tile (f32)
    xt_ref,                     # (1, 1,  W, Cin)   row above the tile (clamped)
    xb_ref,                     # (1, 1,  W, Cin)   row below the tile (clamped)
    w1_ref,                     # (Cin, P)          conv1 1x1 weight, bn1 scale folded in
    b1_ref,                     # (1, P)            bn1 bias (f32)
    w2_ref,                     # (9P, P)           conv2 3x3 weight, bn2 scale folded in
    b2_ref,                     # (1, P)            bn2 bias (f32)
    w3_ref,                     # (P, 4P)           conv3 1x1 weight, bn3 scale folded in
    b3_ref,                     # (1, 4P)           bn3 bias (f32)
    out_ref,                    # (1, TH, W, 4P)    output tile
):
    _, TH, W, Cin = x_ref.shape
    P = w1_ref.shape[1]
    cdt = w1_ref.dtype                       # matmul operand dtype (bf16 or f32)

    t = pl.program_id(1)
    nt = pl.num_programs(1)

    xc = x_ref[0]                            # (TH, W, Cin) f32 — also the residual
    xt = xt_ref[0]                           # (1, W, Cin)
    xb = xb_ref[0]                           # (1, W, Cin)

    # ---- conv1 (1x1) + bn1 + relu, recomputed on TH+2 rows (halo recompute) ----
    x_halo = jnp.concatenate([xt, xc, xb], axis=0)                  # (TH+2, W, Cin)
    x2d = x_halo.reshape((TH + 2) * W, Cin).astype(cdt)
    o1 = jnp.dot(x2d, w1_ref[...], preferred_element_type=jnp.float32)
    o1 = jnp.maximum(o1 + b1_ref[...], 0.0).reshape(TH + 2, W, P)

    # Halo rows that fall outside the image must be exact zeros (conv2 pads its
    # *input*, i.e. the conv1 output) — zero them when this tile touches the edge.
    top_keep = (t > 0).astype(o1.dtype)
    bot_keep = (t < nt - 1).astype(o1.dtype)
    o1 = jnp.concatenate(
        [o1[0:1] * top_keep, o1[1:TH + 1], o1[TH + 1:TH + 2] * bot_keep],
        axis=0,
    ).astype(cdt)                                                   # (TH+2, W, P)

    # ---- conv2 (3x3, pad=1, stride=1) as ONE MXU dot with K = 9P ----
    zcol = jnp.zeros((TH + 2, 1, P), cdt)
    o1p = jnp.concatenate([zcol, o1, zcol], axis=1)                 # (TH+2, W+2, P)
    taps = []
    for dy in range(3):
        for dx in range(3):
            taps.append(o1p[dy:dy + TH, dx:dx + W, :])              # (TH, W, P)
    patches = jnp.concatenate(taps, axis=-1).reshape(TH * W, 9 * P)
    o2 = jnp.dot(patches, w2_ref[...], preferred_element_type=jnp.float32)
    o2 = jnp.maximum(o2 + b2_ref[...], 0.0).astype(cdt)             # (TH*W, P)

    # ---- conv3 (1x1) + bn3 + residual + relu (fused epilogue) ----
    o3 = jnp.dot(o2, w3_ref[...], preferred_element_type=jnp.float32)   # (TH*W, 4P)
    res = xc.reshape(TH * W, Cin).astype(jnp.float32)
    y = jnp.maximum(o3 + b3_ref[...] + res, 0.0)
    out_ref[...] = y.reshape(1, TH, W, 4 * P).astype(out_ref.dtype)


def fold_bn(gamma, beta, mean, var, eps=1e-5):
    """BatchNorm2d eval-mode affine fold: y = x*scale + bias."""
    scale = gamma / jnp.sqrt(var + eps)
    bias = beta - mean * scale
    return scale.reshape(1, -1), bias.reshape(1, -1)


def _pick_tile_h(H, W, Cin, P, budget_bytes=12 * 1024 * 1024):
    """Largest divisor of H whose per-tile working set (incl. double-buffered
    in/out blocks and in-kernel temporaries) fits the activation budget."""
    best = 1
    for th in range(1, H + 1):
        if H % th != 0:
            continue
        hr = th + 2
        in_b = hr * W * Cin * 4                      # input rows (f32)
        out_b = th * W * 4 * P * 4                   # output tile (f32)
        tmp_b = (hr * W * P * 4                      # o1 (f32)
                 + hr * (W + 2) * P * 2              # o1 padded (bf16)
                 + th * W * 9 * P * 2                # im2col patches (bf16)
                 + th * W * P * 4                    # o2 (f32)
                 + th * W * 4 * P * 4)               # o3 / y (f32)
        if 2 * (in_b + out_b) + tmp_b <= budget_bytes:
            best = th
    return best


def bottleneck_forward(x_nchw, params, *, compute_dtype=jnp.bfloat16, tile_h=None):
    """x_nchw: (N, Cin, H, W) float32. Returns (N, 4*planes, H, W).

    compute_dtype: matmul operand dtype (bf16 recommended on v6e/v7x).
    """
    x_nhwc = jnp.transpose(x_nchw, (0, 2, 3, 1))
    N, H, W, Cin = x_nhwc.shape
    P = params["w1"].shape[1]
    assert Cin == 4 * P, (
        "identity residual requires inplanes == planes*expansion (downsample=None)")

    if tile_h is None:
        tile_h = _pick_tile_h(H, W, Cin, P)
    TH = int(tile_h)
    assert H % TH == 0, f"tile_h={TH} must divide H={H}"
    nt = H // TH

    # Fold the BN scale into the conv weights once (conv has no bias, so
    # (x @ w) * s + b == x @ (w * s) + b).  Weights are tiny; done at trace time.
    w1 = (params["w1"] * params["s1"]).astype(compute_dtype)                 # (Cin, P)
    w2 = (params["w2"] * params["s2"].reshape(1, 1, 1, -1)).reshape(9 * P, P)
    w2 = w2.astype(compute_dtype)                                            # (9P, P)
    w3 = (params["w3"] * params["s3"]).astype(compute_dtype)                 # (P, 4P)
    b1 = params["b1"].astype(jnp.float32)
    b2 = params["b2"].astype(jnp.float32)
    b3 = params["b3"].astype(jnp.float32)

    const2 = lambda n, t: (0, 0)   # weights / biases: same block every step -> resident

    itemsize = jnp.dtype(compute_dtype).itemsize
    flops = 2 * N * H * W * (Cin * P + 9 * P * P + P * 4 * P)
    bytes_accessed = (N * H * W * (Cin + 4 * P)) * 4 + \
        (w1.size + w2.size + w3.size) * itemsize + (b1.size + b2.size + b3.size) * 4

    out_nhwc = pl.pallas_call(
        bottleneck_kernel,
        out_shape=jax.ShapeDtypeStruct((N, H, W, 4 * P), x_nchw.dtype),
        grid=(N, nt),
        in_specs=[
            # center rows of the tile
            pl.BlockSpec((1, TH, W, Cin), lambda n, t: (n, t, 0, 0)),
            # one halo row above / below (index clamped at image edges; the kernel
            # zeroes the corresponding conv1-output rows there)
            pl.BlockSpec((1, 1, W, Cin),
                         lambda n, t: (n, jnp.maximum(t * TH - 1, 0), 0, 0)),
            pl.BlockSpec((1, 1, W, Cin),
                         lambda n, t: (n, jnp.minimum((t + 1) * TH, H - 1), 0, 0)),
            # conv1 / bn1
            pl.BlockSpec((Cin, P), const2),
            pl.BlockSpec((1, P), const2),
            # conv2 / bn2
            pl.BlockSpec((9 * P, P), const2),
            pl.BlockSpec((1, P), const2),
            # conv3 / bn3
            pl.BlockSpec((P, 4 * P), const2),
            pl.BlockSpec((1, 4 * P), const2),
        ],
        out_specs=pl.BlockSpec((1, TH, W, 4 * P), lambda n, t: (n, t, 0, 0)),
        compiler_params=pltpu.CompilerParams(
            dimension_semantics=("parallel", "parallel"),
            vmem_limit_bytes=48 * 1024 * 1024,
        ),
        cost_estimate=pl.CostEstimate(
            flops=flops, transcendentals=0, bytes_accessed=bytes_accessed),
    )(
        x_nhwc, x_nhwc, x_nhwc,
        w1, b1,
        w2, b2,
        w3, b3,
    )
    return jnp.transpose(out_nhwc, (0, 3, 1, 2))


def reference_forward(x_nchw, params):
    """Pure-JAX NCHW reference identical to the PyTorch forward (eval-mode BN)."""
    def conv(x, w_hwio, pad):
        w_oihw = jnp.transpose(w_hwio, (3, 2, 0, 1))
        return jax.lax.conv_general_dilated(
            x, w_oihw, window_strides=(1, 1), padding=pad,
            dimension_numbers=("NCHW", "OIHW", "NCHW"))

    def affine(x, s, b):
        return x * s.reshape(1, -1, 1, 1) + b.reshape(1, -1, 1, 1)

    w1 = params["w1"][None, None]            # (1,1,Cin,P)
    w3 = params["w3"][None, None]            # (1,1,P,4P)
    out = jax.nn.relu(affine(conv(x_nchw, w1, "VALID"), params["s1"], params["b1"]))
    out = jax.nn.relu(affine(conv(out, params["w2"], "SAME"), params["s2"], params["b2"]))
    out = affine(conv(out, w3, "VALID"), params["s3"], params["b3"])
    return jax.nn.relu(out + x_nchw)


if __name__ == "__main__":
    # Small shapes: inplanes = planes * expansion so downsample=None holds.
    N, planes, H, W = 2, 4, 16, 16
    inplanes = planes * 4  # 16

    key = jax.random.PRNGKey(0)
    ks = jax.random.split(key, 8)

    x = jax.random.normal(ks[0], (N, inplanes, H, W), jnp.float32)

    w1 = 0.1 * jax.random.normal(ks[1], (inplanes, planes), jnp.float32)
    w2 = 0.1 * jax.random.normal(ks[2], (3, 3, planes, planes), jnp.float32)
    w3 = 0.1 * jax.random.normal(ks[3], (planes, planes * 4), jnp.float32)

    def bn_params(k, c):
        k1, k2, k3, k4 = jax.random.split(k, 4)
        gamma = 1.0 + 0.1 * jax.random.normal(k1, (c,), jnp.float32)
        beta = 0.1 * jax.random.normal(k2, (c,), jnp.float32)
        mean = 0.1 * jax.random.normal(k3, (c,), jnp.float32)
        var = jnp.abs(jax.random.normal(k4, (c,), jnp.float32)) + 0.5
        return fold_bn(gamma, beta, mean, var)

    s1, b1 = bn_params(ks[4], planes)
    s2, b2 = bn_params(ks[5], planes)
    s3, b3 = bn_params(ks[6], planes * 4)

    params = dict(w1=w1, s1=s1, b1=b1,
                  w2=w2, s2=s2, b2=b2,
                  w3=w3, s3=s3, b3=b3)

    ref = jax.block_until_ready(reference_forward(x, params))

    run = jax.jit(bottleneck_forward, static_argnames=("compute_dtype", "tile_h"))

    # Strict structural check in f32 (exercises halo / tiling logic at tight tolerance).
    out_f32 = jax.block_until_ready(run(x, params, compute_dtype=jnp.float32, tile_h=8))
    assert out_f32.shape == (N, planes * 4, H, W)
    assert jnp.allclose(out_f32, ref, rtol=1e-3, atol=1e-3), \
        float(jnp.max(jnp.abs(out_f32 - ref)))

    # bf16-operand / f32-accumulate MXU path at several tile heights (incl. halo cases).
    for th in (4, 8, 16):
        out = jax.block_until_ready(run(x, params, tile_h=th))
        assert out.shape == (N, planes * 4, H, W)
        assert jnp.allclose(out, ref, rtol=2e-2, atol=2e-2), \
            (th, float(jnp.max(jnp.abs(out - ref))))

    print("KERNEL_OK")
</pallas_src>

<mosaic_0001>
module attributes {stable_mosaic.version = 11 : i64} {
  func.func @bottleneck_kernel(%arg0: i32, %arg1: i32, %arg2: memref<1x8x16x16xf32, #tpu.memory_space<vmem>>, %arg3: memref<1x1x16x16xf32, #tpu.memory_space<vmem>>, %arg4: memref<1x1x16x16xf32, #tpu.memory_space<vmem>>, %arg5: memref<16x4xf32, #tpu.memory_space<vmem>>, %arg6: memref<1x4xf32, #tpu.memory_space<vmem>>, %arg7: memref<36x4xf32, #tpu.memory_space<vmem>>, %arg8: memref<1x4xf32, #tpu.memory_space<vmem>>, %arg9: memref<4x16xf32, #tpu.memory_space<vmem>>, %arg10: memref<1x16xf32, #tpu.memory_space<vmem>>, %arg11: memref<1x8x16x16xf32, #tpu.memory_space<vmem>>) attributes {dimension_semantics = [#tpu.dimension_semantics<parallel>, #tpu.dimension_semantics<parallel>], iteration_bounds = array<i64: 2, 2>, scalar_prefetch = 0 : i64, scratch_operands = 0 : i64, tpu.core_type = #tpu.core_type<tc>, window_params = [{transform_indices = @transform_0, window_bounds = array<i64: 1, 8, 16, 16>}, {transform_indices = @transform_1, window_bounds = array<i64: 1, 1, 16, 16>}, {transform_indices = @transform_2, window_bounds = array<i64: 1, 1, 16, 16>}, {pipeline_mode = #tpu.pipeline_mode<synchronous>, transform_indices = @transform_3, window_bounds = array<i64: 16, 4>}, {pipeline_mode = #tpu.pipeline_mode<synchronous>, transform_indices = @transform_4, window_bounds = array<i64: 1, 4>}, {pipeline_mode = #tpu.pipeline_mode<synchronous>, transform_indices = @transform_5, window_bounds = array<i64: 36, 4>}, {pipeline_mode = #tpu.pipeline_mode<synchronous>, transform_indices = @transform_6, window_bounds = array<i64: 1, 4>}, {pipeline_mode = #tpu.pipeline_mode<synchronous>, transform_indices = @transform_7, window_bounds = array<i64: 4, 16>}, {pipeline_mode = #tpu.pipeline_mode<synchronous>, transform_indices = @transform_8, window_bounds = array<i64: 1, 16>}, {transform_indices = @transform_9, window_bounds = array<i64: 1, 8, 16, 16>}]} {
    %c0 = arith.constant 0 : index
    %c0_0 = arith.constant 0 : index
    %c0_1 = arith.constant 0 : index
    %c0_2 = arith.constant 0 : index
    %0 = vector.load %arg2[%c0, %c0_0, %c0_1, %c0_2] : memref<1x8x16x16xf32, #tpu.memory_space<vmem>>, vector<1x8x16x16xf32>
    %1 = vector.shape_cast %0 : vector<1x8x16x16xf32> to vector<8x16x16xf32>
    %c0_3 = arith.constant 0 : index
    %c0_4 = arith.constant 0 : index
    %c0_5 = arith.constant 0 : index
    %c0_6 = arith.constant 0 : index
    %2 = vector.load %arg3[%c0_3, %c0_4, %c0_5, %c0_6] : memref<1x1x16x16xf32, #tpu.memory_space<vmem>>, vector<1x1x16x16xf32>
    %3 = vector.shape_cast %2 : vector<1x1x16x16xf32> to vector<1x16x16xf32>
    %c0_7 = arith.constant 0 : index
    %c0_8 = arith.constant 0 : index
    %c0_9 = arith.constant 0 : index
    %c0_10 = arith.constant 0 : index
    %4 = vector.load %arg4[%c0_7, %c0_8, %c0_9, %c0_10] : memref<1x1x16x16xf32, #tpu.memory_space<vmem>>, vector<1x1x16x16xf32>
    %5 = vector.shape_cast %4 : vector<1x1x16x16xf32> to vector<1x16x16xf32>
    %6 = tpu.concatenate %3, %1, %5 in 0 : vector<1x16x16xf32>, vector<8x16x16xf32>, vector<1x16x16xf32> -> vector<10x16x16xf32>
    %7 = vector.shape_cast %6 : vector<10x16x16xf32> to vector<160x16xf32>
    %c0_11 = arith.constant 0 : index
    %c0_12 = arith.constant 0 : index
    %8 = vector.load %arg5[%c0_11, %c0_12] : memref<16x4xf32, #tpu.memory_space<vmem>>, vector<16x4xf32>
    %cst = arith.constant dense<0.000000e+00> : vector<160x4xf32>
    %9 = tpu.matmul %7, %8, %cst {dimension_numbers = #tpu.dot_dimension_numbers<[1], [0], [0], [1], [0, 0, 1, 1], [], []>} : vector<160x16xf32>, vector<16x4xf32>, vector<160x4xf32> -> vector<160x4xf32>
    %c0_13 = arith.constant 0 : index
    %c0_14 = arith.constant 0 : index
    %10 = vector.load %arg6[%c0_13, %c0_14] : memref<1x4xf32, #tpu.memory_space<vmem>>, vector<1x4xf32>
    %11 = vector.broadcast %10 : vector<1x4xf32> to vector<160x4xf32>
    %12 = arith.addf %9, %11 : vector<160x4xf32>
    %cst_15 = arith.constant 0.000000e+00 : f32
    %13 = vector.broadcast %cst_15 : f32 to vector<160x4xf32>
    %14 = arith.maximumf %12, %13 : vector<160x4xf32>
    %15 = vector.shape_cast %14 : vector<160x4xf32> to vector<10x16x4xf32>
    %c0_i32 = arith.constant 0 : i32
    %16 = arith.cmpi sgt, %arg1, %c0_i32 : i32
    %17 = arith.extui %16 : i1 to i32
    %18 = arith.sitofp %17 : i32 to f32
    %c1_i32 = arith.constant 1 : i32
    %19 = arith.cmpi slt, %arg1, %c1_i32 : i32
    %20 = arith.extui %19 : i1 to i32
    %21 = arith.sitofp %20 : i32 to f32
    %22 = vector.extract_strided_slice %15 {offsets = [0, 0, 0], sizes = [1, 16, 4], strides = [1, 1, 1]} : vector<10x16x4xf32> to vector<1x16x4xf32>
    %23 = vector.broadcast %18 : f32 to vector<1x16x4xf32>
    %24 = arith.mulf %22, %23 : vector<1x16x4xf32>
    %25 = vector.extract_strided_slice %15 {offsets = [1, 0, 0], sizes = [8, 16, 4], strides = [1, 1, 1]} : vector<10x16x4xf32> to vector<8x16x4xf32>
    %26 = vector.extract_strided_slice %15 {offsets = [9, 0, 0], sizes = [1, 16, 4], strides = [1, 1, 1]} : vector<10x16x4xf32> to vector<1x16x4xf32>
    %27 = vector.broadcast %21 : f32 to vector<1x16x4xf32>
    %28 = arith.mulf %26, %27 : vector<1x16x4xf32>
    %29 = tpu.concatenate %24, %25, %28 in 0 : vector<1x16x4xf32>, vector<8x16x4xf32>, vector<1x16x4xf32> -> vector<10x16x4xf32>
    %cst_16 = arith.constant 0.000000e+00 : f32
    %30 = vector.broadcast %cst_16 : f32 to vector<10x1x4xf32>
    %31 = tpu.concatenate %30, %29, %30 in 1 : vector<10x1x4xf32>, vector<10x16x4xf32>, vector<10x1x4xf32> -> vector<10x18x4xf32>
    %32 = vector.extract_strided_slice %31 {offsets = [0, 0, 0], sizes = [8, 16, 4], strides = [1, 1, 1]} : vector<10x18x4xf32> to vector<8x16x4xf32>
    %33 = vector.extract_strided_slice %31 {offsets = [0, 1, 0], sizes = [8, 16, 4], strides = [1, 1, 1]} : vector<10x18x4xf32> to vector<8x16x4xf32>
    %34 = vector.extract_strided_slice %31 {offsets = [0, 2, 0], sizes = [8, 16, 4], strides = [1, 1, 1]} : vector<10x18x4xf32> to vector<8x16x4xf32>
    %35 = vector.extract_strided_slice %31 {offsets = [1, 0, 0], sizes = [8, 16, 4], strides = [1, 1, 1]} : vector<10x18x4xf32> to vector<8x16x4xf32>
    %36 = vector.extract_strided_slice %31 {offsets = [1, 1, 0], sizes = [8, 16, 4], strides = [1, 1, 1]} : vector<10x18x4xf32> to vector<8x16x4xf32>
    %37 = vector.extract_strided_slice %31 {offsets = [1, 2, 0], sizes = [8, 16, 4], strides = [1, 1, 1]} : vector<10x18x4xf32> to vector<8x16x4xf32>
    %38 = vector.extract_strided_slice %31 {offsets = [2, 0, 0], sizes = [8, 16, 4], strides = [1, 1, 1]} : vector<10x18x4xf32> to vector<8x16x4xf32>
    %39 = vector.extract_strided_slice %31 {offsets = [2, 1, 0], sizes = [8, 16, 4], strides = [1, 1, 1]} : vector<10x18x4xf32> to vector<8x16x4xf32>
    %40 = vector.extract_strided_slice %31 {offsets = [2, 2, 0], sizes = [8, 16, 4], strides = [1, 1, 1]} : vector<10x18x4xf32> to vector<8x16x4xf32>
    %41 = tpu.concatenate %32, %33, %34, %35, %36, %37, %38, %39, %40 in 2 : vector<8x16x4xf32>, vector<8x16x4xf32>, vector<8x16x4xf32>, vector<8x16x4xf32>, vector<8x16x4xf32>, vector<8x16x4xf32>, vector<8x16x4xf32>, vector<8x16x4xf32>, vector<8x16x4xf32> -> vector<8x16x36xf32>
    %42 = vector.shape_cast %41 : vector<8x16x36xf32> to vector<128x36xf32>
    %c0_17 = arith.constant 0 : index
    %c0_18 = arith.constant 0 : index
    %43 = vector.load %arg7[%c0_17, %c0_18] : memref<36x4xf32, #tpu.memory_space<vmem>>, vector<36x4xf32>
    %cst_19 = arith.constant dense<0.000000e+00> : vector<128x4xf32>
    %44 = tpu.matmul %42, %43, %cst_19 {dimension_numbers = #tpu.dot_dimension_numbers<[1], [0], [0], [1], [0, 0, 1, 1], [], []>} : vector<128x36xf32>, vector<36x4xf32>, vector<128x4xf32> -> vector<128x4xf32>
    %c0_20 = arith.constant 0 : index
    %c0_21 = arith.constant 0 : index
    %45 = vector.load %arg8[%c0_20, %c0_21] : memref<1x4xf32, #tpu.memory_space<vmem>>, vector<1x4xf32>
    %46 = vector.broadcast %45 : vector<1x4xf32> to vector<128x4xf32>
    %47 = arith.addf %44, %46 : vector<128x4xf32>
    %cst_22 = arith.constant 0.000000e+00 : f32
    %48 = vector.broadcast %cst_22 : f32 to vector<128x4xf32>
    %49 = arith.maximumf %47, %48 : vector<128x4xf32>
    %c0_23 = arith.constant 0 : index
    %c0_24 = arith.constant 0 : index
    %50 = vector.load %arg9[%c0_23, %c0_24] : memref<4x16xf32, #tpu.memory_space<vmem>>, vector<4x16xf32>
    %cst_25 = arith.constant dense<0.000000e+00> : vector<128x16xf32>
    %51 = tpu.matmul %49, %50, %cst_25 {dimension_numbers = #tpu.dot_dimension_numbers<[1], [0], [0], [1], [0, 0, 1, 1], [], []>} : vector<128x4xf32>, vector<4x16xf32>, vector<128x16xf32> -> vector<128x16xf32>
    %52 = vector.shape_cast %1 : vector<8x16x16xf32> to vector<128x16xf32>
    %c0_26 = arith.constant 0 : index
    %c0_27 = arith.constant 0 : index
    %53 = vector.load %arg10[%c0_26, %c0_27] : memref<1x16xf32, #tpu.memory_space<vmem>>, vector<1x16xf32>
    %54 = vector.broadcast %53 : vector<1x16xf32> to vector<128x16xf32>
    %55 = arith.addf %51, %54 : vector<128x16xf32>
    %56 = arith.addf %55, %52 : vector<128x16xf32>
    %cst_28 = arith.constant 0.000000e+00 : f32
    %57 = vector.broadcast %cst_28 : f32 to vector<128x16xf32>
    %58 = arith.maximumf %56, %57 : vector<128x16xf32>
    %59 = vector.shape_cast %58 : vector<128x16xf32> to vector<1x8x16x16xf32>
    %c0_29 = arith.constant 0 : index
    %c0_30 = arith.constant 0 : index
    %c0_31 = arith.constant 0 : index
    %c0_32 = arith.constant 0 : index
    %60 = vector.load %arg11[%c0_29, %c0_30, %c0_31, %c0_32] : memref<1x8x16x16xf32, #tpu.memory_space<vmem>>, vector<1x8x16x16xf32>
    tpu.vector_store %arg11[%c0_29, %c0_30, %c0_31, %c0_32], %59 {strides = array<i32>} : memref<1x8x16x16xf32, #tpu.memory_space<vmem>>, vector<1x8x16x16xf32>,
    return
  }
  func.func @transform_0(%arg0: i32, %arg1: i32) -> (i32, i32, i32, i32) {
    %c0_i32 = arith.constant 0 : i32
    %c0_i32_0 = arith.constant 0 : i32
    %c0_i32_1 = arith.constant 0 : i32
    return %arg0, %arg1, %c0_i32, %c0_i32_0 : i32, i32, i32, i32
  }
  func.func @transform_1(%arg0: i32, %arg1: i32) -> (i32, i32, i32, i32) {
    %c8_i32 = arith.constant 8 : i32
    %0 = arith.muli %arg1, %c8_i32 : i32
    %c1_i32 = arith.constant 1 : i32
    %1 = arith.subi %0, %c1_i32 : i32
    %c0_i32 = arith.constant 0 : i32
    %2 = arith.maxsi %1, %c0_i32 : i32
    %c0_i32_0 = arith.constant 0 : i32
    %c0_i32_1 = arith.constant 0 : i32
    %c0_i32_2 = arith.constant 0 : i32
    return %arg0, %2, %c0_i32_0, %c0_i32_1 : i32, i32, i32, i32
  }
  func.func @transform_2(%arg0: i32, %arg1: i32) -> (i32, i32, i32, i32) {
    %c1_i32 = arith.constant 1 : i32
    %0 = arith.addi %arg1, %c1_i32 : i32
    %c8_i32 = arith.constant 8 : i32
    %1 = arith.muli %0, %c8_i32 : i32
    %c15_i32 = arith.constant 15 : i32
    %2 = arith.minsi %1, %c15_i32 : i32
    %c0_i32 = arith.constant 0 : i32
    %c0_i32_0 = arith.constant 0 : i32
    %c0_i32_1 = arith.constant 0 : i32
    return %arg0, %2, %c0_i32, %c0_i32_0 : i32, i32, i32, i32
  }
  func.func @transform_3(%arg0: i32, %arg1: i32) -> (i32, i32) {
    %c0_i32 = arith.constant 0 : i32
    %c0_i32_0 = arith.constant 0 : i32
    %c0_i32_1 = arith.constant 0 : i32
    return %c0_i32, %c0_i32_0 : i32, i32
  }
  func.func @transform_4(%arg0: i32, %arg1: i32) -> (i32, i32) {
    %c0_i32 = arith.constant 0 : i32
    %c0_i32_0 = arith.constant 0 : i32
    %c0_i32_1 = arith.constant 0 : i32
    return %c0_i32, %c0_i32_0 : i32, i32
  }
  func.func @transform_5(%arg0: i32, %arg1: i32) -> (i32, i32) {
    %c0_i32 = arith.constant 0 : i32
    %c0_i32_0 = arith.constant 0 : i32
    %c0_i32_1 = arith.constant 0 : i32
    return %c0_i32, %c0_i32_0 : i32, i32
  }
  func.func @transform_6(%arg0: i32, %arg1: i32) -> (i32, i32) {
    %c0_i32 = arith.constant 0 : i32
    %c0_i32_0 = arith.constant 0 : i32
    %c0_i32_1 = arith.constant 0 : i32
    return %c0_i32, %c0_i32_0 : i32, i32
  }
  func.func @transform_7(%arg0: i32, %arg1: i32) -> (i32, i32) {
    %c0_i32 = arith.constant 0 : i32
    %c0_i32_0 = arith.constant 0 : i32
    %c0_i32_1 = arith.constant 0 : i32
    return %c0_i32, %c0_i32_0 : i32, i32
  }
  func.func @transform_8(%arg0: i32, %arg1: i32) -> (i32, i32) {
    %c0_i32 = arith.constant 0 : i32
    %c0_i32_0 = arith.constant 0 : i32
    %c0_i32_1 = arith.constant 0 : i32
    return %c0_i32, %c0_i32_0 : i32, i32
  }
  func.func @transform_9(%arg0: i32, %arg1: i32) -> (i32, i32, i32, i32) {
    %c0_i32 = arith.constant 0 : i32
    %c0_i32_0 = arith.constant 0 : i32
    %c0_i32_1 = arith.constant 0 : i32
    return %arg0, %arg1, %c0_i32, %c0_i32_0 : i32, i32, i32, i32
  }
}

</mosaic_0001>

<llo_original>
// kernel: bottleneck_forward.1
$region0: #{bottleneck_forward.1}
  #allocation0 [shape = 'u32[]', space=smem, size = 0x4, offset = 0x4, fixed_abs, tag = 'smem constant byte address 0x4 - core index']
  #allocation1 [shape = 'u32[144,128]{1,0:T(1,128)}', space=vmem, size = 0x12000, scoped, tag = 'internal scratch']
  %s0 = inlined_call_operand.vmem [shape: f32[2,16,16,16], index: 0, kind: input, shape index: {}, may-alias: {0,1,2}]
  %s1 = inlined_call_operand.vmem [shape: f32[2,16,16,16], index: 1, kind: input, shape index: {}, may-alias: {0,1,2}]
  %s2 = inlined_call_operand.vmem [shape: f32[2,16,16,16], index: 2, kind: input, shape index: {}, may-alias: {0,1,2}]
  %s3 = inlined_call_operand.vmem [shape: f32[16,4], index: 3, kind: input, shape index: {}]
  %s4 = inlined_call_operand.vmem [shape: f32[1,4], index: 4, kind: input, shape index: {}]
  %s5 = inlined_call_operand.vmem [shape: f32[36,4], index: 5, kind: input, shape index: {}]
  %s6 = inlined_call_operand.vmem [shape: f32[1,4], index: 6, kind: input, shape index: {}]
  %s7 = inlined_call_operand.vmem [shape: f32[4,16], index: 7, kind: input, shape index: {}]
  %s8 = inlined_call_operand.vmem [shape: f32[1,16], index: 8, kind: input, shape index: {}]
  %s9 = inlined_call_operand.vmem [shape: f32[2,16,16,16], index: 9, kind: output, shape index: {}]
  %s10 = sld [smem:[#allocation0]]
  $region69: #{bottleneck_forward.1} parent=0
    _
  %s12 = ssub.s32 1, %s10
  %s13 = scalar_select 0, %s12, %s10
  loop: start=0, step=1, limit=6
  $region2: #{bottleneck_forward.1} parent=0 // loop_pre_header
    _
  $region3: #{bottleneck_forward.1} parent=0 // loop_header
    %s15 = sphi 0, %s19
    %p16 = scmp.ge.s32.totalorder %s15, 6
    %s22 = sphi 0, %s34
    %s23 = sphi 0, %s30
    %s24 = sphi 0, %s22
    %s25 = sphi 0, %s23
    %s26 = sphi 0, %s24
    %s27 = sphi 0, %s25
    %s39 = sphi 0, %s41
    %s42 = sphi 0, %s39
    %s43 = sphi 0, %s42
    %s59 = sphi 0, %s43
    %s75 = sphi 0, %s77
    %s78 = sphi 0, %s75
    %s79 = sphi 0, %s78
    %s95 = sphi 0, %s79
    %s111 = sphi 0, %s113
    %s114 = sphi 0, %s111
    %s115 = sphi 0, %s114
    %s131 = sphi 0, %s115
    %s135 = sphi 0, %s135
    %s137 = sphi 0, %s135
    %s138 = sphi 0, %s137
    %s152 = sphi 0, %s138
    %s156 = sphi 0, %s156
    %s158 = sphi 0, %s156
    %s159 = sphi 0, %s158
    %s173 = sphi 0, %s159
    %s177 = sphi 0, %s177
    %s179 = sphi 0, %s177
    %s180 = sphi 0, %s179
    %s194 = sphi 0, %s180
    %s198 = sphi 0, %s198
    %s200 = sphi 0, %s198
    %s201 = sphi 0, %s200
    %s215 = sphi 0, %s201
    %s219 = sphi 0, %s219
    %s221 = sphi 0, %s219
    %s222 = sphi 0, %s221
    %s236 = sphi 0, %s222
    %s240 = sphi 0, %s240
    %s242 = sphi 0, %s240
    %s243 = sphi 0, %s242
    %s257 = sphi 0, %s243
    %s265 = sphi 0, %s267
    %s268 = sphi 0, %s265
    %s269 = sphi 0, %s268
    %s285 = sphi 0, %s269
  $region4: #{bottleneck_forward.1} parent=0 // loop_header_branch
    %18 = sbr.rel (%p16) target = $region8
  $region5: #{bottleneck_forward.1} parent=0 // loop_body
    %s20 = ssub.s32 %s15, 1
    %s21 = ssub.s32 %s15, 2
    %s28 = sadd.s32 1, %s23
    %p29 = scmp.ge.s32.totalorder %s28, 2
    %s30 = scalar_select %p29, 0, %s28
    %s31 = sadd.s32 1, %s22
    %s32 = scalar_select %p29, %s31, %s22
    %p33 = scmp.ge.s32.totalorder %s32, 2
    %s34 = scalar_select %p33, 0, %s32
    %s35 = ssub.s32 %s22, %s34
    %s36 = ssub.s32 %s23, %s30
    %s37 = sor.u32 %s35, %s36
    %p38 = scmp.eq.s32.totalorder %s37, 0
    %s40 = sadd.s32 %s39, 1
    %s41 = scalar_select %p38, %s39, %s40
    %p44 = pneg %p38
    %p45 = scmp.eq.s32.totalorder %s15, 3
    %p46 = por %p44, %p45
    %p47 = scmp.ne.s32.totalorder %s39, %s42
    %p48 = scmp.eq.s32.totalorder %s15, 0
    %p49 = por %p47, %p48
    %p50 = scmp.ne.s32.totalorder %s39, %s42
    %p51 = scmp.eq.s32.totalorder %s20, 3
    %p52 = por %p50, %p51
    %p53 = scmp.ne.s32.totalorder %s42, %s43
    %p54 = scmp.eq.s32.totalorder %s20, 0
    %p55 = por %p53, %p54
    %p56 = scmp.ne.s32.totalorder %s42, %s43
    %p57 = scmp.eq.s32.totalorder %s21, 3
    %p58 = por %p56, %p57
    %p60 = scmp.ne.s32.totalorder %s43, %s59
    %p61 = scmp.eq.s32.totalorder %s21, 0
    %p62 = por %p60, %p61
    %s63 = smul.u32 %s23, 8
    %s64 = ssub.s32 %s63, 1
    %p65 = scmp.gt.s32.totalorder %s64, 0
    %s66 = scalar_select %p65, %s64, 0
    %s67 = smul.u32 %s30, 8
    %s68 = ssub.s32 %s67, 1
    %p69 = scmp.gt.s32.totalorder %s68, 0
    %s70 = scalar_select %p69, %s68, 0
    %s71 = ssub.s32 %s22, %s34
    %s72 = ssub.s32 %s66, %s70
    %s73 = sor.u32 %s71, %s72
    %p74 = scmp.eq.s32.totalorder %s73, 0
    %s76 = sadd.s32 %s75, 1
    %s77 = scalar_select %p74, %s75, %s76
    %p80 = pneg %p74
    %p81 = scmp.eq.s32.totalorder %s15, 3
    %p82 = por %p80, %p81
    %p83 = scmp.ne.s32.totalorder %s75, %s78
    %p84 = scmp.eq.s32.totalorder %s15, 0
    %p85 = por %p83, %p84
    %p86 = scmp.ne.s32.totalorder %s75, %s78
    %p87 = scmp.eq.s32.totalorder %s20, 3
    %p88 = por %p86, %p87
    %p89 = scmp.ne.s32.totalorder %s78, %s79
    %p90 = scmp.eq.s32.totalorder %s20, 0
    %p91 = por %p89, %p90
    %p92 = scmp.ne.s32.totalorder %s78, %s79
    %p93 = scmp.eq.s32.totalorder %s21, 3
    %p94 = por %p92, %p93
    %p96 = scmp.ne.s32.totalorder %s79, %s95
    %p97 = scmp.eq.s32.totalorder %s21, 0
    %p98 = por %p96, %p97
    %s99 = sadd.s32 %s23, 1
    %s100 = smul.u32 %s99, 8
    %p101 = scmp.lt.s32.totalorder %s100, 15
    %s102 = scalar_select %p101, %s100, 15
    %s103 = sadd.s32 %s30, 1
    %s104 = smul.u32 %s103, 8
    %p105 = scmp.lt.s32.totalorder %s104, 15
    %s106 = scalar_select %p105, %s104, 15
    %s107 = ssub.s32 %s22, %s34
    %s108 = ssub.s32 %s102, %s106
    %s109 = sor.u32 %s107, %s108
    %p110 = scmp.eq.s32.totalorder %s109, 0
    %s112 = sadd.s32 %s111, 1
    %s113 = scalar_select %p110, %s111, %s112
    %p116 = pneg %p110
    %p117 = scmp.eq.s32.totalorder %s15, 3
    %p118 = por %p116, %p117
    %p119 = scmp.ne.s32.totalorder %s111, %s114
    %p120 = scmp.eq.s32.totalorder %s15, 0
    %p121 = por %p119, %p120
    %p122 = scmp.ne.s32.totalorder %s111, %s114
    %p123 = scmp.eq.s32.totalorder %s20, 3
    %p124 = por %p122, %p123
    %p125 = scmp.ne.s32.totalorder %s114, %s115
    %p126 = scmp.eq.s32.totalorder %s20, 0
    %p127 = por %p125, %p126
    %p128 = scmp.ne.s32.totalorder %s114, %s115
    %p129 = scmp.eq.s32.totalorder %s21, 3
    %p130 = por %p128, %p129
    %p132 = scmp.ne.s32.totalorder %s115, %s131
    %p133 = scmp.eq.s32.totalorder %s21, 0
    %p134 = por %p132, %p133
    %s136 = sadd.s32 %s135, 1
    %p139 = scmp.eq.s32.totalorder %s15, 3
    %p140 = scmp.ne.s32.totalorder %s135, %s137
    %p141 = scmp.eq.s32.totalorder %s15, 0
    %p142 = por %p140, %p141
    %p143 = scmp.ne.s32.totalorder %s135, %s137
    %p144 = scmp.eq.s32.totalorder %s20, 3
    %p145 = por %p143, %p144
    %p146 = scmp.ne.s32.totalorder %s137, %s138
    %p147 = scmp.eq.s32.totalorder %s20, 0
    %p148 = por %p146, %p147
    %p149 = scmp.ne.s32.totalorder %s137, %s138
    %p150 = scmp.eq.s32.totalorder %s21, 3
    %p151 = por %p149, %p150
    %p153 = scmp.ne.s32.totalorder %s138, %s152
    %p154 = scmp.eq.s32.totalorder %s21, 0
    %p155 = por %p153, %p154
    %s157 = sadd.s32 %s156, 1
    %p160 = scmp.eq.s32.totalorder %s15, 3
    %p161 = scmp.ne.s32.totalorder %s156, %s158
    %p162 = scmp.eq.s32.totalorder %s15, 0
    %p163 = por %p161, %p162
    %p164 = scmp.ne.s32.totalorder %s156, %s158
    %p165 = scmp.eq.s32.totalorder %s20, 3
    %p166 = por %p164, %p165
    %p167 = scmp.ne.s32.totalorder %s158, %s159
    %p168 = scmp.eq.s32.totalorder %s20, 0
    %p169 = por %p167, %p168
    %p170 = scmp.ne.s32.totalorder %s158, %s159
    %p171 = scmp.eq.s32.totalorder %s21, 3
    %p172 = por %p170, %p171
    %p174 = scmp.ne.s32.totalorder %s159, %s173
    %p175 = scmp.eq.s32.totalorder %s21, 0
    %p176 = por %p174, %p175
    %s178 = sadd.s32 %s177, 1
    %p181 = scmp.eq.s32.totalorder %s15, 3
    %p182 = scmp.ne.s32.totalorder %s177, %s179
    %p183 = scmp.eq.s32.totalorder %s15, 0
    %p184 = por %p182, %p183
    %p185 = scmp.ne.s32.totalorder %s177, %s179
    %p186 = scmp.eq.s32.totalorder %s20, 3
    %p187 = por %p185, %p186
    %p188 = scmp.ne.s32.totalorder %s179, %s180
    %p189 = scmp.eq.s32.totalorder %s20, 0
    %p190 = por %p188, %p189
    %p191 = scmp.ne.s32.totalorder %s179, %s180
    %p192 = scmp.eq.s32.totalorder %s21, 3
    %p193 = por %p191, %p192
    %p195 = scmp.ne.s32.totalorder %s180, %s194
    %p196 = scmp.eq.s32.totalorder %s21, 0
    %p197 = por %p195, %p196
    %s199 = sadd.s32 %s198, 1
    %p202 = scmp.eq.s32.totalorder %s15, 3
    %p203 = scmp.ne.s32.totalorder %s198, %s200
    %p204 = scmp.eq.s32.totalorder %s15, 0
    %p205 = por %p203, %p204
    %p206 = scmp.ne.s32.totalorder %s198, %s200
    %p207 = scmp.eq.s32.totalorder %s20, 3
    %p208 = por %p206, %p207
    %p209 = scmp.ne.s32.totalorder %s200, %s201
    %p210 = scmp.eq.s32.totalorder %s20, 0
    %p211 = por %p209, %p210
    %p212 = scmp.ne.s32.totalorder %s200, %s201
    %p213 = scmp.eq.s32.totalorder %s21, 3
    %p214 = por %p212, %p213
    %p216 = scmp.ne.s32.totalorder %s201, %s215
    %p217 = scmp.eq.s32.totalorder %s21, 0
    %p218 = por %p216, %p217
    %s220 = sadd.s32 %s219, 1
    %p223 = scmp.eq.s32.totalorder %s15, 3
    %p224 = scmp.ne.s32.totalorder %s219, %s221
    %p225 = scmp.eq.s32.totalorder %s15, 0
    %p226 = por %p224, %p225
    %p227 = scmp.ne.s32.totalorder %s219, %s221
    %p228 = scmp.eq.s32.totalorder %s20, 3
    %p229 = por %p227, %p228
    %p230 = scmp.ne.s32.totalorder %s221, %s222
    %p231 = scmp.eq.s32.totalorder %s20, 0
    %p232 = por %p230, %p231
    %p233 = scmp.ne.s32.totalorder %s221, %s222
    %p234 = scmp.eq.s32.totalorder %s21, 3
    %p235 = por %p233, %p234
    %p237 = scmp.ne.s32.totalorder %s222, %s236
    %p238 = scmp.eq.s32.totalorder %s21, 0
    %p239 = por %p237, %p238
    %s241 = sadd.s32 %s240, 1
    %p244 = scmp.eq.s32.totalorder %s15, 3
    %p245 = scmp.ne.s32.totalorder %s240, %s242
    %p246 = scmp.eq.s32.totalorder %s15, 0
    %p247 = por %p245, %p246
    %p248 = scmp.ne.s32.totalorder %s240, %s242
    %p249 = scmp.eq.s32.totalorder %s20, 3
    %p250 = por %p248, %p249
    %p251 = scmp.ne.s32.totalorder %s242, %s243
    %p252 = scmp.eq.s32.totalorder %s20, 0
    %p253 = por %p251, %p252
    %p254 = scmp.ne.s32.totalorder %s242, %s243
    %p255 = scmp.eq.s32.totalorder %s21, 3
    %p256 = por %p254, %p255
    %p258 = scmp.ne.s32.totalorder %s243, %s257
    %p259 = scmp.eq.s32.totalorder %s21, 0
    %p260 = por %p258, %p259
    %s261 = ssub.s32 %s22, %s34
    %s262 = ssub.s32 %s23, %s30
    %s263 = sor.u32 %s261, %s262
    %p264 = scmp.eq.s32.totalorder %s263, 0
    %s266 = sadd.s32 %s265, 1
    %s267 = scalar_select %p264, %s265, %s266
    %p270 = pneg %p264
    %p271 = scmp.eq.s32.totalorder %s15, 3
    %p272 = por %p270, %p271
    %p273 = scmp.ne.s32.totalorder %s265, %s268
    %p274 = scmp.eq.s32.totalorder %s15, 0
    %p275 = por %p273, %p274
    %p276 = scmp.ne.s32.totalorder %s265, %s268
    %p277 = scmp.eq.s32.totalorder %s20, 3
    %p278 = por %p276, %p277
    %p279 = scmp.ne.s32.totalorder %s268, %s269
    %p280 = scmp.eq.s32.totalorder %s20, 0
    %p281 = por %p279, %p280
    %p282 = scmp.ne.s32.totalorder %s268, %s269
    %p283 = scmp.eq.s32.totalorder %s21, 3
    %p284 = por %p282, %p283
    %p286 = scmp.ne.s32.totalorder %s269, %s285
    %p287 = scmp.eq.s32.totalorder %s21, 0
    %p288 = por %p286, %p287
    %p289 = scmp.le.s32.totalorder 1, %s15
    %p290 = scmp.lt.s32.totalorder %s15, 5
    %p291 = pnand %p289, %p290
    %p292 = pneg %p291
    // Predicated region
    $region9: #{bottleneck_forward.1} parent=5 // pred_check
      _
    $region10: #{bottleneck_forward.1} parent=5 // pred_check_branch
      %294 = sbr.rel (%p291) target = $region12
    $region11: #{bottleneck_forward.1} parent=5 // pred_region
      %s295 = ssub.s32 %s15, 1
      // Predicated region
      $region13: #{bottleneck_forward.1} parent=11 // pred_check
        %p296 = pneg %p148
      $region14: #{bottleneck_forward.1} parent=11 // pred_check_branch
        %298 = sbr.rel (%p296) target = $region16
      $region15: #{bottleneck_forward.1} parent=11 // pred_region
        _
      $region16: #{bottleneck_forward.1} parent=11 // pred_fallthru
        _
      // Predicated region
      $region17: #{bottleneck_forward.1} parent=11 // pred_check
        %p299 = pneg %p169
      $region18: #{bottleneck_forward.1} parent=11 // pred_check_branch
        %301 = sbr.rel (%p299) target = $region20
      $region19: #{bottleneck_forward.1} parent=11 // pred_region
        _
      $region20: #{bottleneck_forward.1} parent=11 // pred_fallthru
        _
      // Predicated region
      $region21: #{bottleneck_forward.1} parent=11 // pred_check
        %p302 = pneg %p190
      $region22: #{bottleneck_forward.1} parent=11 // pred_check_branch
        %304 = sbr.rel (%p302) target = $region24
      $region23: #{bottleneck_forward.1} parent=11 // pred_region
        _
      $region24: #{bottleneck_forward.1} parent=11 // pred_fallthru
        _
      // Predicated region
      $region25: #{bottleneck_forward.1} parent=11 // pred_check
        %p305 = pneg %p211
      $region26: #{bottleneck_forward.1} parent=11 // pred_check_branch
        %307 = sbr.rel (%p305) target = $region28
      $region27: #{bottleneck_forward.1} parent=11 // pred_region
        _
      $region28: #{bottleneck_forward.1} parent=11 // pred_fallthru
        _
      // Predicated region
      $region29: #{bottleneck_forward.1} parent=11 // pred_check
        %p308 = pneg %p232
      $region30: #{bottleneck_forward.1} parent=11 // pred_check_branch
        %310 = sbr.rel (%p308) target = $region32
      $region31: #{bottleneck_forward.1} parent=11 // pred_region
        _
      $region32: #{bottleneck_forward.1} parent=11 // pred_fallthru
        _
      // Predicated region
      $region33: #{bottleneck_forward.1} parent=11 // pred_check
        %p311 = pneg %p253
      $region34: #{bottleneck_forward.1} parent=11 // pred_check_branch
        %313 = sbr.rel (%p311) target = $region36
      $region35: #{bottleneck_forward.1} parent=11 // pred_region
        _
      $region36: #{bottleneck_forward.1} parent=11 // pred_fallthru
        _
    $region12: #{bottleneck_forward.1} parent=5 // pred_fallthru
      _
    %p314 = scmp.lt.s32.totalorder %s15, 4
    // Predicated region
    $region37: #{bottleneck_forward.1} parent=5 // pred_check
      %p315 = pneg %p314
    $region38: #{bottleneck_forward.1} parent=5 // pred_check_branch
      %317 = sbr.rel (%p315) target = $region40
    $region39: #{bottleneck_forward.1} parent=5 // pred_region
      // Predicated region
      $region41: #{bottleneck_forward.1} parent=39 // pred_check
        %p318 = pneg %p49
      $region42: #{bottleneck_forward.1} parent=39 // pred_check_branch
        %320 = sbr.rel (%p318) target = $region44
      $region43: #{bottleneck_forward.1} parent=39 // pred_region
        %s321 = smul.u32 8, %s23
        %p322 = scmp.lt.s32.totalorder %s22, 1
        %s323 = scalar_select %p322, %s22, 1
        %p324 = scmp.lt.s32.totalorder %s321, 15
        %s325 = scalar_select %p324, %s321, 15
        %s326 = smul.addr %s325, 2
        %s327 = smul.addr %s323, 32
        %s328 = sadd.s32 %s326, %s327
        %s329 = smul.addr %s328, 8
        %s330 = scalar_lea.vmem %s0, %s329
        %s331 = smul.u32 8, %s23
      $region44: #{bottleneck_forward.1} parent=39 // pred_fallthru
        _
      // Predicated region
      $region45: #{bottleneck_forward.1} parent=39 // pred_check
        %p332 = pneg %p85
      $region46: #{bottleneck_forward.1} parent=39 // pred_check_branch
        %334 = sbr.rel (%p332) target = $region48
      $region47: #{bottleneck_forward.1} parent=39 // pred_region
        %s335 = smul.u32 %s23, 8
        %s336 = ssub.s32 %s335, 1
        %p337 = scmp.gt.s32.totalorder %s336, 0
        %s338 = scalar_select %p337, %s336, 0
        %p339 = scmp.lt.s32.totalorder %s22, 1
        %s340 = scalar_select %p339, %s22, 1
        %p341 = scmp.lt.s32.totalorder %s338, 15
        %s342 = scalar_select %p341, %s338, 15
        %s343 = smul.addr %s342, 2
        %s344 = smul.addr %s340, 32
        %s345 = sadd.s32 %s343, %s344
        %s346 = smul.addr %s345, 8
        %s347 = scalar_lea.vmem %s1, %s346
        %s348 = smul.u32 %s23, 8
        %s349 = ssub.s32 %s348, 1
        %p350 = scmp.gt.s32.totalorder %s349, 0
        %s351 = scalar_select %p350, %s349, 0
      $region48: #{bottleneck_forward.1} parent=39 // pred_fallthru
        _
      // Predicated region
      $region49: #{bottleneck_forward.1} parent=39 // pred_check
        %p352 = pneg %p121
      $region50: #{bottleneck_forward.1} parent=39 // pred_check_branch
        %354 = sbr.rel (%p352) target = $region52
      $region51: #{bottleneck_forward.1} parent=39 // pred_region
        %s355 = sadd.s32 %s23, 1
        %s356 = smul.u32 %s355, 8
        %p357 = scmp.lt.s32.totalorder %s356, 15
        %s358 = scalar_select %p357, %s356, 15
        %p359 = scmp.lt.s32.totalorder %s22, 1
        %s360 = scalar_select %p359, %s22, 1
        %p361 = scmp.lt.s32.totalorder %s358, 15
        %s362 = scalar_select %p361, %s358, 15
        %s363 = smul.addr %s362, 2
        %s364 = smul.addr %s360, 32
        %s365 = sadd.s32 %s363, %s364
        %s366 = smul.addr %s365, 8
        %s367 = scalar_lea.vmem %s2, %s366
        %s368 = sadd.s32 %s23, 1
        %s369 = smul.u32 %s368, 8
        %p370 = scmp.lt.s32.totalorder %s369, 15
        %s371 = scalar_select %p370, %s369, 15
      $region52: #{bottleneck_forward.1} parent=39 // pred_fallthru
        _
    $region40: #{bottleneck_forward.1} parent=5 // pred_fallthru
      _
    %p372 = scmp.le.s32.totalorder 1, %s15
    %p373 = scmp.lt.s32.totalorder %s15, 5
    %p374 = pnand %p372, %p373
    %p375 = pneg %p374
    // Predicated region
    $region53: #{bottleneck_forward.1} parent=5 // pred_check
      _
    $region54: #{bottleneck_forward.1} parent=5 // pred_check_branch
      %377 = sbr.rel (%p374) target = $region56
    $region55: #{bottleneck_forward.1} parent=5 // pred_region
      %s378 = ssub.s32 %s15, 1
      %s379 = smul.u32 8, %s25
      %p380 = scmp.lt.s32.totalorder %s24, 1
      %s381 = scalar_select %p380, %s24, 1
      %p382 = scmp.lt.s32.totalorder %s379, 15
      %s383 = scalar_select %p382, %s379, 15
      %s384 = smul.addr %s383, 2
      %s385 = smul.addr %s381, 32
      %s386 = sadd.s32 %s384, %s385
      %s387 = smul.addr %s386, 8
      %s388 = scalar_lea.vmem %s0, %s387
      %p389 = pneg %p55
      %p390 = pneg %p52
      %s391 = smul.u32 %s25, 8
      %s392 = ssub.s32 %s391, 1
      %p393 = scmp.gt.s32.totalorder %s392, 0
      %s394 = scalar_select %p393, %s392, 0
      %p395 = scmp.lt.s32.totalorder %s24, 1
      %s396 = scalar_select %p395, %s24, 1
      %p397 = scmp.lt.s32.totalorder %s394, 15
      %s398 = scalar_select %p397, %s394, 15
      %s399 = smul.addr %s398, 2
      %s400 = smul.addr %s396, 32
      %s401 = sadd.s32 %s399, %s400
      %s402 = smul.addr %s401, 8
      %s403 = scalar_lea.vmem %s1, %s402
      %p404 = pneg %p91
      %p405 = pneg %p88
      %s406 = sadd.s32 %s25, 1
      %s407 = smul.u32 %s406, 8
      %p408 = scmp.lt.s32.totalorder %s407, 15
      %s409 = scalar_select %p408, %s407, 15
      %p410 = scmp.lt.s32.totalorder %s24, 1
      %s411 = scalar_select %p410, %s24, 1
      %p412 = scmp.lt.s32.totalorder %s409, 15
      %s413 = scalar_select %p412, %s409, 15
      %s414 = smul.addr %s413, 2
      %s415 = smul.addr %s411, 32
      %s416 = sadd.s32 %s414, %s415
      %s417 = smul.addr %s416, 8
      %s418 = scalar_lea.vmem %s2, %s417
      %p419 = pneg %p127
      %p420 = pneg %p124
      %p421 = pneg %p148
      %p422 = pneg %p145
      %p423 = pneg %p169
      %p424 = pneg %p166
      %p425 = pneg %p190
      %p426 = pneg %p187
      %p427 = pneg %p211
      %p428 = pneg %p208
      %p429 = pneg %p232
      %p430 = pneg %p229
      %p431 = pneg %p253
      %p432 = pneg %p250
      %p433 = pneg %p281
      %p434 = pneg %p278
      %s435 = smul.u32 8, %s25
      %p436 = scmp.lt.s32.totalorder %s24, 1
      %s437 = scalar_select %p436, %s24, 1
      %p438 = scmp.lt.s32.totalorder %s435, 15
      %s439 = scalar_select %p438, %s435, 15
      %s440 = smul.addr %s439, 2
      %s441 = smul.addr %s437, 32
      %s442 = sadd.s32 %s440, %s441
      %s443 = smul.addr %s442, 8
      %s444 = scalar_lea.vmem %s9, %s443
      %s445 = smul.u32 8, %s25
      %p446 = scmp.lt.s32.totalorder %s24, 1
      %s447 = scalar_select %p446, %s24, 1
      %p448 = scmp.lt.s32.totalorder %s445, 15
      %s449 = scalar_select %p448, %s445, 15
      %s450 = smul.addr %s449, 2
      %s451 = smul.addr %s447, 32
      %s452 = sadd.s32 %s450, %s451
      %s453 = smul.addr %s452, 8
      %s454 = scalar_lea.vmem %s0, %s453
      %s455 = smul.u32 8, %s25
      %s456 = smul.u32 %s25, 8
      %s457 = ssub.s32 %s456, 1
      %p458 = scmp.gt.s32.totalorder %s457, 0
      %s459 = scalar_select %p458, %s457, 0
      %p460 = scmp.lt.s32.totalorder %s24, 1
      %s461 = scalar_select %p460, %s24, 1
      %p462 = scmp.lt.s32.totalorder %s459, 15
      %s463 = scalar_select %p462, %s459, 15
      %s464 = smul.addr %s463, 2
      %s465 = smul.addr %s461, 32
      %s466 = sadd.s32 %s464, %s465
      %s467 = smul.addr %s466, 8
      %s468 = scalar_lea.vmem %s1, %s467
      %s469 = smul.u32 %s25, 8
      %s470 = ssub.s32 %s469, 1
      %p471 = scmp.gt.s32.totalorder %s470, 0
      %s472 = scalar_select %p471, %s470, 0
      %s473 = sadd.s32 %s25, 1
      %s474 = smul.u32 %s473, 8
      %p475 = scmp.lt.s32.totalorder %s474, 15
      %s476 = scalar_select %p475, %s474, 15
      %p477 = scmp.lt.s32.totalorder %s24, 1
      %s478 = scalar_select %p477, %s24, 1
      %p479 = scmp.lt.s32.totalorder %s476, 15
      %s480 = scalar_select %p479, %s476, 15
      %s481 = smul.addr %s480, 2
      %s482 = smul.addr %s478, 32
      %s483 = sadd.s32 %s481, %s482
      %s484 = smul.addr %s483, 8
      %s485 = scalar_lea.vmem %s2, %s484
      %s486 = sadd.s32 %s25, 1
      %s487 = smul.u32 %s486, 8
      %p488 = scmp.lt.s32.totalorder %s487, 15
      %s489 = scalar_select %p488, %s487, 15
      %s490 = smul.u32 8, %s25
      %p491 = scmp.lt.s32.totalorder %s24, 1
      %s492 = scalar_select %p491, %s24, 1
      %p493 = scmp.lt.s32.totalorder %s490, 15
      %s494 = scalar_select %p493, %s490, 15
      %s495 = smul.addr %s494, 2
      %s496 = smul.addr %s492, 32
      %s497 = sadd.s32 %s495, %s496
      %s498 = smul.addr %s497, 8
      %s499 = scalar_lea.vmem %s9, %s498
      %s500 = smul.u32 8, %s25
      %v501 = vld [vmem:[%s454] sm:$0xff]
      %v502 = vld [vmem:[%s454 + $0x8] sm:$0xff]
      %v503 = vld [vmem:[%s454 + $0x10] sm:$0xff]
      %v504 = vld [vmem:[%s454 + $0x18] sm:$0xff]
      %v505 = vld [vmem:[%s454 + $0x20] sm:$0xff]
      %v506 = vld [vmem:[%s454 + $0x28] sm:$0xff]
      %v507 = vld [vmem:[%s454 + $0x30] sm:$0xff]
      %v508 = vld [vmem:[%s454 + $0x38] sm:$0xff]
      %v509 = vld [vmem:[%s454 + $0x40] sm:$0xff]
      %v510 = vld [vmem:[%s454 + $0x48] sm:$0xff]
      %v511 = vld [vmem:[%s454 + $0x50] sm:$0xff]
      %v512 = vld [vmem:[%s454 + $0x58] sm:$0xff]
      %v513 = vld [vmem:[%s454 + $0x60] sm:$0xff]
      %v514 = vld [vmem:[%s454 + $0x68] sm:$0xff]
      %v515 = vld [vmem:[%s454 + $0x70] sm:$0xff]
      %v516 = vld [vmem:[%s454 + $0x78] sm:$0xff]
      %v517 = vld [vmem:[%s468] sm:$0xff]
      %v518 = vld [vmem:[%s468 + $0x8] sm:$0xff]
      %v519 = vld [vmem:[%s485] sm:$0xff]
      %v520 = vld [vmem:[%s485 + $0x8] sm:$0xff]
      %v521 = vld [vmem:[%s3] sm:$0xff]
      %v522 = vld [vmem:[%s3 + $0x8] sm:$0xff]
      %v523 = vld [vmem:[%s4] sm:$0x1]
      %v525 = vlaneseq
      %v526 = vshrl.u32 %v525, 7
      %v527 = vsub.s32 0, %v526
      %v528 = vrot.slane %v523, %v527
      %vm530 = vcmask 130048
      %v532 = vsel %vm530, %v517, 0
      %v535 = vsel %vm530, %v518, 0
      %v538 = vsel %vm530, %v501, 0
      %v541 = vsel %vm530, %v502, 0
      %v544 = vsel %vm530, %v503, 0
      %v547 = vsel %vm530, %v504, 0
      %v550 = vsel %vm530, %v505, 0
      %v553 = vsel %vm530, %v506, 0
      %v556 = vsel %vm530, %v507, 0
      %v559 = vsel %vm530, %v508, 0
      %v562 = vsel %vm530, %v509, 0
      %v565 = vsel %vm530, %v510, 0
      %v568 = vsel %vm530, %v511, 0
      %v571 = vsel %vm530, %v512, 0
      %v574 = vsel %vm530, %v513, 0
      %v577 = vsel %vm530, %v514, 0
      %v580 = vsel %vm530, %v515, 0
      %v583 = vsel %vm530, %v516, 0
      %v586 = vsel %vm530, %v519, 0
      %v589 = vsel %vm530, %v520, 0
      %591 = vmatprep.subr.mxu0 0.0
      %592 = vmatpush1.msra.mxu0 %v521
      %593 = vmatprep.subr.mxu0 0.0
      %594 = vmatpush1.msra.mxu0 %v522
      %595 = vmatprep.subr.mxu0 0.0
      %596 = vmatpush1.msra.mxu0 0.0
      %597 = vmatprep.subr.mxu0 0.0
      %598 = vmatpush1.msra.mxu0 0.0
      %599 = vmatprep.subr.mxu0 0.0
      %600 = vmatpush1.msra.mxu0 0.0
      %601 = vmatprep.subr.mxu0 0.0
      %602 = vmatpush1.msra.mxu0 0.0
      %603 = vmatprep.subr.mxu0 0.0
      %604 = vmatpush1.msra.mxu0 0.0
      %605 = vmatprep.subr.mxu0 0.0
      %606 = vmatpush1.msra.mxu0 0.0
      %607 = vmatprep.subr.mxu0 0.0
      %608 = vmatpush1.msra.mxu0 0.0
      %609 = vmatprep.subr.mxu0 0.0
      %610 = vmatpush1.msra.mxu0 0.0
      %611 = vmatprep.subr.mxu0 0.0
      %612 = vmatpush1.msra.mxu0 0.0
      %613 = vmatprep.subr.mxu0 0.0
      %614 = vmatpush1.msra.mxu0 0.0
      %615 = vmatprep.subr.mxu0 0.0
      %616 = vmatpush1.msra.mxu0 0.0
      %617 = vmatprep.subr.mxu0 0.0
      %618 = vmatpush1.msra.mxu0 0.0
      %619 = vmatprep.subr.mxu0 0.0
      %620 = vmatpush1.msra.mxu0 0.0
      %621 = vmatprep.subr.mxu0 0.0
      %622 = vmatpush1.msra.mxu0 0.0
      %623 = vmatprep.subr.mxu0 0.0
      %624 = vmatpush1.msra.mxu0 0.0
      %625 = vmatprep.subr.mxu0 0.0
      %626 = vmatpush1.msra.mxu0 0.0
      %627 = vmatprep.subr.mxu0 0.0
      %628 = vmatpush1.msra.mxu0 0.0
      %629 = vmatprep.subr.mxu0 0.0
      %630 = vmatpush1.msra.mxu0 0.0
      %631 = vmatprep.subr.mxu0 0.0
      %632 = vmatpush1.msra.mxu0 0.0
      %633 = vmatprep.subr.mxu0 0.0
      %634 = vmatpush1.msra.mxu0 0.0
      %635 = vmatprep.subr.mxu0 0.0
      %636 = vmatpush1.msra.mxu0 0.0
      %637 = vmatprep.subr.mxu0 0.0
      %638 = vmatpush1.msra.mxu0 0.0
      %639 = vmatprep.subr.mxu0 0.0
      %640 = vmatpush1.msra.mxu0 0.0
      %641 = vmatprep.subr.mxu0 0.0
      %642 = vmatpush1.msra.mxu0 0.0
      %643 = vmatprep.subr.mxu0 0.0
      %644 = vmatpush1.msra.mxu0 0.0
      %645 = vmatprep.subr.mxu0 0.0
      %646 = vmatpush1.msra.mxu0 0.0
      %647 = vmatprep.subr.mxu0 0.0
      %648 = vmatpush1.msra.mxu0 0.0
      %649 = vmatprep.subr.mxu0 0.0
      %650 = vmatpush1.msra.mxu0 0.0
      %651 = vmatprep.subr.mxu0 0.0
      %652 = vmatpush1.msra.mxu0 0.0
      %653 = vmatprep.subr.mxu0 0.0
      %654 = vmatpush1.msra.mxu0 0.0
      %655 = vmatprep.mubr.f32.mxu0 0.0
      %656 = vmatmul.mubr.f32.gmra.mrb[0].mxu0 %v532
      %v657 = vpop.f32.mrb[0].mxu0
      %v658 = vadd.f32 %v528, %v657
      %v659 = vpop.f32.mrb[0].mxu0
      %660 = vmatprep.mubr.f32.mxu0 0.0
      %661 = vmatmul.mubr.f32.gmra.mrb[0].mxu0 %v535
      %v662 = vpop.f32.mrb[0].mxu0
      %v663 = vadd.f32 %v528, %v662
      %v664 = vpop.f32.mrb[0].mxu0
      %665 = vmatprep.mubr.f32.mxu0 0.0
      %666 = vmatmul.mubr.f32.gmra.mrb[0].mxu0 %v538
      %v667 = vpop.f32.mrb[0].mxu0
      %v668 = vadd.f32 %v528, %v667
      %v669 = vpop.f32.mrb[0].mxu0
      %670 = vmatprep.mubr.f32.mxu0 0.0
      %671 = vmatmul.mubr.f32.gmra.mrb[0].mxu0 %v541
      %v672 = vpop.f32.mrb[0].mxu0
      %v673 = vadd.f32 %v528, %v672
      %v674 = vpop.f32.mrb[0].mxu0
      %675 = vmatprep.mubr.f32.mxu0 0.0
      %676 = vmatmul.mubr.f32.gmra.mrb[0].mxu0 %v544
      %v677 = vpop.f32.mrb[0].mxu0
      %v678 = vadd.f32 %v528, %v677
      %v679 = vpop.f32.mrb[0].mxu0
      %680 = vmatprep.mubr.f32.mxu0 0.0
      %681 = vmatmul.mubr.f32.gmra.mrb[0].mxu0 %v547
      %v682 = vpop.f32.mrb[0].mxu0
      %v683 = vadd.f32 %v528, %v682
      %v684 = vpop.f32.mrb[0].mxu0
      %685 = vmatprep.mubr.f32.mxu0 0.0
      %686 = vmatmul.mubr.f32.gmra.mrb[0].mxu0 %v550
      %v687 = vpop.f32.mrb[0].mxu0
      %v688 = vadd.f32 %v528, %v687
      %v689 = vpop.f32.mrb[0].mxu0
      %690 = vmatprep.mubr.f32.mxu0 0.0
      %691 = vmatmul.mubr.f32.gmra.mrb[0].mxu0 %v553
      %v692 = vpop.f32.mrb[0].mxu0
      %v693 = vadd.f32 %v528, %v692
      %v694 = vpop.f32.mrb[0].mxu0
      %695 = vmatprep.mubr.f32.mxu0 0.0
      %696 = vmatmul.mubr.f32.gmra.mrb[0].mxu0 %v556
      %v697 = vpop.f32.mrb[0].mxu0
      %v698 = vadd.f32 %v528, %v697
      %v699 = vpop.f32.mrb[0].mxu0
      %700 = vmatprep.mubr.f32.mxu0 0.0
      %701 = vmatmul.mubr.f32.gmra.mrb[0].mxu0 %v559
      %v702 = vpop.f32.mrb[0].mxu0
      %v703 = vadd.f32 %v528, %v702
      %v704 = vpop.f32.mrb[0].mxu0
      %705 = vmatprep.mubr.f32.mxu0 0.0
      %706 = vmatmul.mubr.f32.gmra.mrb[0].mxu0 %v562
      %v707 = vpop.f32.mrb[0].mxu0
      %v708 = vadd.f32 %v528, %v707
      %v709 = vpop.f32.mrb[0].mxu0
      %710 = vmatprep.mubr.f32.mxu0 0.0
      %711 = vmatmul.mubr.f32.gmra.mrb[0].mxu0 %v565
      %v712 = vpop.f32.mrb[0].mxu0
      %v713 = vadd.f32 %v528, %v712
      %v714 = vpop.f32.mrb[0].mxu0
      %715 = vmatprep.mubr.f32.mxu0 0.0
      %716 = vmatmul.mubr.f32.gmra.mrb[0].mxu0 %v568
      %v717 = vpop.f32.mrb[0].mxu0
      %v718 = vadd.f32 %v528, %v717
      %v719 = vpop.f32.mrb[0].mxu0
      %720 = vmatprep.mubr.f32.mxu0 0.0
      %721 = vmatmul.mubr.f32.gmra.mrb[0].mxu0 %v571
      %v722 = vpop.f32.mrb[0].mxu0
      %v723 = vadd.f32 %v528, %v722
      %v724 = vpop.f32.mrb[0].mxu0
      %725 = vmatprep.mubr.f32.mxu0 0.0
      %726 = vmatmul.mubr.f32.gmra.mrb[0].mxu0 %v574
      %v727 = vpop.f32.mrb[0].mxu0
      %v728 = vadd.f32 %v528, %v727
      %v729 = vpop.f32.mrb[0].mxu0
      %730 = vmatprep.mubr.f32.mxu0 0.0
      %731 = vmatmul.mubr.f32.gmra.mrb[0].mxu0 %v577
      %v732 = vpop.f32.mrb[0].mxu0
      %v733 = vadd.f32 %v528, %v732
      %v734 = vpop.f32.mrb[0].mxu0
      %735 = vmatprep.mubr.f32.mxu0 0.0
      %736 = vmatmul.mubr.f32.gmra.mrb[0].mxu0 %v580
      %v737 = vpop.f32.mrb[0].mxu0
      %v738 = vadd.f32 %v528, %v737
      %v739 = vpop.f32.mrb[0].mxu0
      %740 = vmatprep.mubr.f32.mxu0 0.0
      %741 = vmatmul.mubr.f32.gmra.mrb[0].mxu0 %v583
      %v742 = vpop.f32.mrb[0].mxu0
      %v743 = vadd.f32 %v528, %v742
      %v744 = vpop.f32.mrb[0].mxu0
      %745 = vmatprep.mubr.f32.mxu0 0.0
      %746 = vmatmul.mubr.f32.gmra.mrb[0].mxu0 %v586
      %v747 = vpop.f32.mrb[0].mxu0
      %v748 = vadd.f32 %v528, %v747
      %v749 = vpop.f32.mrb[0].mxu0
      %750 = vmatprep.mubr.f32.mxu0 0.0
      %751 = vmatmul.mubr.f32.gmra.mrb[0].mxu0 %v589
      %v752 = vpop.f32.mrb[0].mxu0
      %v753 = vadd.f32 %v528, %v752
      %v754 = vpop.f32.mrb[0].mxu0
      %755 = vdwg.mxu0
      %v756 = vmax.f32 %v658, 0.0
      %v757 = vmax.f32 %v663, 0.0
      %v758 = vmax.f32 %v668, 0.0
      %v759 = vmax.f32 %v673, 0.0
      %v760 = vmax.f32 %v678, 0.0
      %v761 = vmax.f32 %v683, 0.0
      %v762 = vmax.f32 %v688, 0.0
      %v763 = vmax.f32 %v693, 0.0
      %v764 = vmax.f32 %v698, 0.0
      %v765 = vmax.f32 %v703, 0.0
      %v766 = vmax.f32 %v708, 0.0
      %v767 = vmax.f32 %v713, 0.0
      %v768 = vmax.f32 %v718, 0.0
      %v769 = vmax.f32 %v723, 0.0
      %v770 = vmax.f32 %v728, 0.0
      %v771 = vmax.f32 %v733, 0.0
      %v772 = vmax.f32 %v738, 0.0
      %v773 = vmax.f32 %v743, 0.0
      %v774 = vmax.f32 %v748, 0.0
      %v775 = vmax.f32 %v753, 0.0
      %p776 = scmp.gt.s32.totalorder %s25, 0
      %s777 = scalar_select %p776, 1, 0
      %s778 = scvt.s32.f32 %s777
      %p779 = scmp.lt.s32.totalorder %s25, 1
      %s780 = scalar_select %p779, 1, 0
      %s781 = scvt.s32.f32 %s780
      %v782 = vstv %s778
      %v783 = vmul.f32 %v756, %v782
      %v784 = vmul.f32 %v757, %v782
      %v785 = vstv %s781
      %v786 = vmul.f32 %v774, %v785
      %v787 = vmul.f32 %v775, %v785
      %vm808 = vcmask 1040384
      %v809 = vrot.slane %v783, 7
      %v810 = vrot.slane %v784, 7
      %v811 = vsel %vm808, %v809, %v810
      %v812 = vrot.slane %v758, 7
      %v813 = vrot.slane %v759, 7
      %v814 = vsel %vm808, %v812, %v813
      %v815 = vrot.slane %v760, 7
      %v816 = vrot.slane %v761, 7
      %v817 = vsel %vm808, %v815, %v816
      %v818 = vrot.slane %v762, 7
      %v819 = vrot.slane %v763, 7
      %v820 = vsel %vm808, %v818, %v819
      %v821 = vrot.slane %v764, 7
      %v822 = vrot.slane %v765, 7
      %v823 = vsel %vm808, %v821, %v822
      %v824 = vrot.slane %v766, 7
      %v825 = vrot.slane %v767, 7
      %v826 = vsel %vm808, %v824, %v825
      %v827 = vrot.slane %v768, 7
      %v828 = vrot.slane %v769, 7
      %v829 = vsel %vm808, %v827, %v828
      %v830 = vrot.slane %v770, 7
      %v831 = vrot.slane %v771, 7
      %v832 = vsel %vm808, %v830, %v831
      %v833 = vrot.slane %v772, 7
      %v834 = vrot.slane %v773, 7
      %v835 = vsel %vm808, %v833, %v834
      %v836 = vrot.slane %v786, 7
      %v837 = vrot.slane %v787, 7
      %v838 = vsel %vm808, %v836, %v837
      %v867 = vsel %vm808, 0.0, %v809
      %v868 = vsel %vm808, 0.0, %v812
      %v869 = vsel %vm808, 0.0, %v815
      %v870 = vsel %vm808, 0.0, %v818
      %v871 = vsel %vm808, 0.0, %v821
      %v872 = vsel %vm808, 0.0, %v824
      %v873 = vsel %vm808, 0.0, %v827
      %v874 = vsel %vm808, 0.0, %v830
      %v875 = vsel %vm808, 0.0, %v833
      %v876 = vsel %vm808, 0.0, %v836
      %v877 = vsel %vm808, %v810, 0.0
      %v878 = vsel %vm808, %v813, 0.0
      %v879 = vsel %vm808, %v816, 0.0
      %v880 = vsel %vm808, %v819, 0.0
      %v881 = vsel %vm808, %v822, 0.0
      %v882 = vsel %vm808, %v825, 0.0
      %v883 = vsel %vm808, %v828, 0.0
      %v884 = vsel %vm808, %v831, 0.0
      %v885 = vsel %vm808, %v834, 0.0
      %v886 = vsel %vm808, %v837, 0.0
      %vm903 = vcmask 1046528
      %v904 = vrot.slane %v867, 1
      %v905 = vrot.slane %v811, 1
      %v906 = vsel %vm903, %v904, %v905
      %v907 = vrot.slane %v877, 1
      %v908 = vsel %vm903, %v905, %v907
      %v909 = vrot.slane %v868, 1
      %v910 = vrot.slane %v814, 1
      %v911 = vsel %vm903, %v909, %v910
      %v912 = vrot.slane %v878, 1
      %v913 = vsel %vm903, %v910, %v912
      %v914 = vrot.slane %v869, 1
      %v915 = vrot.slane %v817, 1
      %v916 = vsel %vm903, %v914, %v915
      %v917 = vrot.slane %v879, 1
      %v918 = vsel %vm903, %v915, %v917
      %v919 = vrot.slane %v870, 1
      %v920 = vrot.slane %v820, 1
      %v921 = vsel %vm903, %v919, %v920
      %v922 = vrot.slane %v880, 1
      %v923 = vsel %vm903, %v920, %v922
      %v924 = vrot.slane %v871, 1
      %v925 = vrot.slane %v823, 1
      %v926 = vsel %vm903, %v924, %v925
      %v927 = vrot.slane %v881, 1
      %v928 = vsel %vm903, %v925, %v927
      %v929 = vrot.slane %v872, 1
      %v930 = vrot.slane %v826, 1
      %v931 = vsel %vm903, %v929, %v930
      %v932 = vrot.slane %v882, 1
      %v933 = vsel %vm903, %v930, %v932
      %v934 = vrot.slane %v873, 1
      %v935 = vrot.slane %v829, 1
      %v936 = vsel %vm903, %v934, %v935
      %v937 = vrot.slane %v883, 1
      %v938 = vsel %vm903, %v935, %v937
      %v939 = vrot.slane %v874, 1
      %v940 = vrot.slane %v832, 1
      %v941 = vsel %vm903, %v939, %v940
      %v942 = vrot.slane %v884, 1
      %v943 = vsel %vm903, %v940, %v942
      %944 = vrot.lane.b32.xlu0 %v906, 4
      %v945 = vpop.permute.xlu0 %944
      %946 = vrot.lane.b32.xlu0 %v908, 4
      %v947 = vpop.permute.xlu0 %946
      %948 = vrot.lane.b32.xlu0 %v911, 4
      %v949 = vpop.permute.xlu0 %948
      %950 = vrot.lane.b32.xlu0 %v913, 4
      %v951 = vpop.permute.xlu0 %950
      %952 = vrot.lane.b32.xlu0 %v916, 4
      %v953 = vpop.permute.xlu0 %952
      %954 = vrot.lane.b32.xlu0 %v918, 4
      %v955 = vpop.permute.xlu0 %954
      %956 = vrot.lane.b32.xlu0 %v921, 4
      %v957 = vpop.permute.xlu0 %956
      %958 = vrot.lane.b32.xlu0 %v923, 4
      %v959 = vpop.permute.xlu0 %958
      %960 = vrot.lane.b32.xlu0 %v926, 4
      %v961 = vpop.permute.xlu0 %960
      %962 = vrot.lane.b32.xlu0 %v928, 4
      %v963 = vpop.permute.xlu0 %962
      %964 = vrot.lane.b32.xlu0 %v931, 4
      %v965 = vpop.permute.xlu0 %964
      %966 = vrot.lane.b32.xlu0 %v933, 4
      %v967 = vpop.permute.xlu0 %966
      %968 = vrot.lane.b32.xlu0 %v936, 4
      %v969 = vpop.permute.xlu0 %968
      %970 = vrot.lane.b32.xlu0 %v938, 4
      %v971 = vpop.permute.xlu0 %970
      %972 = vrot.lane.b32.xlu0 %v941, 4
      %v973 = vpop.permute.xlu0 %972
      %974 = vrot.lane.b32.xlu0 %v943, 4
      %v975 = vpop.permute.xlu0 %974
      %vm992 = vcmask 1045504
      %v993 = vrot.slane %v867, 2
      %v994 = vrot.slane %v811, 2
      %v995 = vsel %vm992, %v993, %v994
      %v996 = vrot.slane %v877, 2
      %v997 = vsel %vm992, %v994, %v996
      %v998 = vrot.slane %v868, 2
      %v999 = vrot.slane %v814, 2
      %v1000 = vsel %vm992, %v998, %v999
      %v1001 = vrot.slane %v878, 2
      %v1002 = vsel %vm992, %v999, %v1001
      %v1003 = vrot.slane %v869, 2
      %v1004 = vrot.slane %v817, 2
      %v1005 = vsel %vm992, %v1003, %v1004
      %v1006 = vrot.slane %v879, 2
      %v1007 = vsel %vm992, %v1004, %v1006
      %v1008 = vrot.slane %v870, 2
      %v1009 = vrot.slane %v820, 2
      %v1010 = vsel %vm992, %v1008, %v1009
      %v1011 = vrot.slane %v880, 2
      %v1012 = vsel %vm992, %v1009, %v1011
      %v1013 = vrot.slane %v871, 2
      %v1014 = vrot.slane %v823, 2
      %v1015 = vsel %vm992, %v1013, %v1014
      %v1016 = vrot.slane %v881, 2
      %v1017 = vsel %vm992, %v1014, %v1016
      %v1018 = vrot.slane %v872, 2
      %v1019 = vrot.slane %v826, 2
      %v1020 = vsel %vm992, %v1018, %v1019
      %v1021 = vrot.slane %v882, 2
      %v1022 = vsel %vm992, %v1019, %v1021
      %v1023 = vrot.slane %v873, 2
      %v1024 = vrot.slane %v829, 2
      %v1025 = vsel %vm992, %v1023, %v1024
      %v1026 = vrot.slane %v883, 2
      %v1027 = vsel %vm992, %v1024, %v1026
      %v1028 = vrot.slane %v874, 2
      %v1029 = vrot.slane %v832, 2
      %v1030 = vsel %vm992, %v1028, %v1029
      %v1031 = vrot.slane %v884, 2
      %v1032 = vsel %vm992, %v1029, %v1031
      %1033 = vrot.lane.b32.xlu0 %v995, 8
      %v1034 = vpop.permute.xlu0 %1033
      %1035 = vrot.lane.b32.xlu0 %v997, 8
      %v1036 = vpop.permute.xlu0 %1035
      %1037 = vrot.lane.b32.xlu0 %v1000, 8
      %v1038 = vpop.permute.xlu0 %1037
      %1039 = vrot.lane.b32.xlu0 %v1002, 8
      %v1040 = vpop.permute.xlu0 %1039
      %1041 = vrot.lane.b32.xlu0 %v1005, 8
      %v1042 = vpop.permute.xlu0 %1041
      %1043 = vrot.lane.b32.xlu0 %v1007, 8
      %v1044 = vpop.permute.xlu0 %1043
      %1045 = vrot.lane.b32.xlu0 %v1010, 8
      %v1046 = vpop.permute.xlu0 %1045
      %1047 = vrot.lane.b32.xlu0 %v1012, 8
      %v1048 = vpop.permute.xlu0 %1047
      %1049 = vrot.lane.b32.xlu0 %v1015, 8
      %v1050 = vpop.permute.xlu0 %1049
      %1051 = vrot.lane.b32.xlu0 %v1017, 8
      %v1052 = vpop.permute.xlu0 %1051
      %1053 = vrot.lane.b32.xlu0 %v1020, 8
      %v1054 = vpop.permute.xlu0 %1053
      %1055 = vrot.lane.b32.xlu0 %v1022, 8
      %v1056 = vpop.permute.xlu0 %1055
      %1057 = vrot.lane.b32.xlu0 %v1025, 8
      %v1058 = vpop.permute.xlu0 %1057
      %1059 = vrot.lane.b32.xlu0 %v1027, 8
      %v1060 = vpop.permute.xlu0 %1059
      %1061 = vrot.lane.b32.xlu0 %v1030, 8
      %v1062 = vpop.permute.xlu0 %1061
      %1063 = vrot.lane.b32.xlu0 %v1032, 8
      %v1064 = vpop.permute.xlu0 %1063
      %1082 = vrot.lane.b32.xlu0 %v868, 12
      %v1083 = vpop.permute.xlu0 %1082
      %1084 = vrot.lane.b32.xlu0 %v814, 12
      %v1085 = vpop.permute.xlu0 %1084
      %1086 = vrot.lane.b32.xlu0 %v869, 12
      %v1087 = vpop.permute.xlu0 %1086
      %1088 = vrot.lane.b32.xlu0 %v817, 12
      %v1089 = vpop.permute.xlu0 %1088
      %1090 = vrot.lane.b32.xlu0 %v870, 12
      %v1091 = vpop.permute.xlu0 %1090
      %1092 = vrot.lane.b32.xlu0 %v820, 12
      %v1093 = vpop.permute.xlu0 %1092
      %1094 = vrot.lane.b32.xlu0 %v871, 12
      %v1095 = vpop.permute.xlu0 %1094
      %1096 = vrot.lane.b32.xlu0 %v823, 12
      %v1097 = vpop.permute.xlu0 %1096
      %1098 = vrot.lane.b32.xlu0 %v872, 12
      %v1099 = vpop.permute.xlu0 %1098
      %1100 = vrot.lane.b32.xlu0 %v826, 12
      %v1101 = vpop.permute.xlu0 %1100
      %1102 = vrot.lane.b32.xlu0 %v873, 12
      %v1103 = vpop.permute.xlu0 %1102
      %1104 = vrot.lane.b32.xlu0 %v829, 12
      %v1105 = vpop.permute.xlu0 %1104
      %1106 = vrot.lane.b32.xlu0 %v874, 12
      %v1107 = vpop.permute.xlu0 %1106
      %1108 = vrot.lane.b32.xlu0 %v832, 12
      %v1109 = vpop.permute.xlu0 %1108
      %1110 = vrot.lane.b32.xlu0 %v875, 12
      %v1111 = vpop.permute.xlu0 %1110
      %1112 = vrot.lane.b32.xlu0 %v835, 12
      %v1113 = vpop.permute.xlu0 %1112
      %v1131 = vrot.slane %v875, 1
      %v1132 = vrot.slane %v835, 1
      %v1133 = vsel %vm903, %v1131, %v1132
      %v1134 = vrot.slane %v885, 1
      %v1135 = vsel %vm903, %v1132, %v1134
      %1136 = vrot.lane.b32.xlu0 %v911, 16
      %v1137 = vpop.permute.xlu0 %1136
      %1138 = vrot.lane.b32.xlu0 %v913, 16
      %v1139 = vpop.permute.xlu0 %1138
      %1140 = vrot.lane.b32.xlu0 %v916, 16
      %v1141 = vpop.permute.xlu0 %1140
      %1142 = vrot.lane.b32.xlu0 %v918, 16
      %v1143 = vpop.permute.xlu0 %1142
      %1144 = vrot.lane.b32.xlu0 %v921, 16
      %v1145 = vpop.permute.xlu0 %1144
      %1146 = vrot.lane.b32.xlu0 %v923, 16
      %v1147 = vpop.permute.xlu0 %1146
      %1148 = vrot.lane.b32.xlu0 %v926, 16
      %v1149 = vpop.permute.xlu0 %1148
      %1150 = vrot.lane.b32.xlu0 %v928, 16
      %v1151 = vpop.permute.xlu0 %1150
      %1152 = vrot.lane.b32.xlu0 %v931, 16
      %v1153 = vpop.permute.xlu0 %1152
      %1154 = vrot.lane.b32.xlu0 %v933, 16
      %v1155 = vpop.permute.xlu0 %1154
      %1156 = vrot.lane.b32.xlu0 %v936, 16
      %v1157 = vpop.permute.xlu0 %1156
      %1158 = vrot.lane.b32.xlu0 %v938, 16
      %v1159 = vpop.permute.xlu0 %1158
      %1160 = vrot.lane.b32.xlu0 %v941, 16
      %v1161 = vpop.permute.xlu0 %1160
      %1162 = vrot.lane.b32.xlu0 %v943, 16
      %v1163 = vpop.permute.xlu0 %1162
      %1164 = vrot.lane.b32.xlu0 %v1133, 16
      %v1165 = vpop.permute.xlu0 %1164
      %1166 = vrot.lane.b32.xlu0 %v1135, 16
      %v1167 = vpop.permute.xlu0 %1166
      %v1184 = vrot.slane %v875, 2
      %v1185 = vrot.slane %v835, 2
      %v1186 = vsel %vm992, %v1184, %v1185
      %v1187 = vrot.slane %v885, 2
      %v1188 = vsel %vm992, %v1185, %v1187
      %1189 = vrot.lane.b32.xlu0 %v1000, 20
      %v1190 = vpop.permute.xlu0 %1189
      %1191 = vrot.lane.b32.xlu0 %v1002, 20
      %v1192 = vpop.permute.xlu0 %1191
      %1193 = vrot.lane.b32.xlu0 %v1005, 20
      %v1194 = vpop.permute.xlu0 %1193
      %1195 = vrot.lane.b32.xlu0 %v1007, 20
      %v1196 = vpop.permute.xlu0 %1195
      %1197 = vrot.lane.b32.xlu0 %v1010, 20
      %v1198 = vpop.permute.xlu0 %1197
      %1199 = vrot.lane.b32.xlu0 %v1012, 20
      %v1200 = vpop.permute.xlu0 %1199
      %1201 = vrot.lane.b32.xlu0 %v1015, 20
      %v1202 = vpop.permute.xlu0 %1201
      %1203 = vrot.lane.b32.xlu0 %v1017, 20
      %v1204 = vpop.permute.xlu0 %1203
      %1205 = vrot.lane.b32.xlu0 %v1020, 20
      %v1206 = vpop.permute.xlu0 %1205
      %1207 = vrot.lane.b32.xlu0 %v1022, 20
      %v1208 = vpop.permute.xlu0 %1207
      %1209 = vrot.lane.b32.xlu0 %v1025, 20
      %v1210 = vpop.permute.xlu0 %1209
      %1211 = vrot.lane.b32.xlu0 %v1027, 20
      %v1212 = vpop.permute.xlu0 %1211
      %1213 = vrot.lane.b32.xlu0 %v1030, 20
      %v1214 = vpop.permute.xlu0 %1213
      %1215 = vrot.lane.b32.xlu0 %v1032, 20
      %v1216 = vpop.permute.xlu0 %1215
      %1217 = vrot.lane.b32.xlu0 %v1186, 20
      %v1218 = vpop.permute.xlu0 %1217
      %1219 = vrot.lane.b32.xlu0 %v1188, 20
      %v1220 = vpop.permute.xlu0 %1219
      %1238 = vrot.lane.b32.xlu0 %v869, 24
      %v1239 = vpop.permute.xlu0 %1238
      %1240 = vrot.lane.b32.xlu0 %v817, 24
      %v1241 = vpop.permute.xlu0 %1240
      %1242 = vrot.lane.b32.xlu0 %v870, 24
      %v1243 = vpop.permute.xlu0 %1242
      %1244 = vrot.lane.b32.xlu0 %v820, 24
      %v1245 = vpop.permute.xlu0 %1244
      %1246 = vrot.lane.b32.xlu0 %v871, 24
      %v1247 = vpop.permute.xlu0 %1246
      %1248 = vrot.lane.b32.xlu0 %v823, 24
      %v1249 = vpop.permute.xlu0 %1248
      %1250 = vrot.lane.b32.xlu0 %v872, 24
      %v1251 = vpop.permute.xlu0 %1250
      %1252 = vrot.lane.b32.xlu0 %v826, 24
      %v1253 = vpop.permute.xlu0 %1252
      %1254 = vrot.lane.b32.xlu0 %v873, 24
      %v1255 = vpop.permute.xlu0 %1254
      %1256 = vrot.lane.b32.xlu0 %v829, 24
      %v1257 = vpop.permute.xlu0 %1256
      %1258 = vrot.lane.b32.xlu0 %v874, 24
      %v1259 = vpop.permute.xlu0 %1258
      %1260 = vrot.lane.b32.xlu0 %v832, 24
      %v1261 = vpop.permute.xlu0 %1260
      %1262 = vrot.lane.b32.xlu0 %v875, 24
      %v1263 = vpop.permute.xlu0 %1262
      %1264 = vrot.lane.b32.xlu0 %v835, 24
      %v1265 = vpop.permute.xlu0 %1264
      %1266 = vrot.lane.b32.xlu0 %v876, 24
      %v1267 = vpop.permute.xlu0 %1266
      %1268 = vrot.lane.b32.xlu0 %v838, 24
      %v1269 = vpop.permute.xlu0 %1268
      %v1287 = vrot.slane %v876, 1
      %v1288 = vrot.slane %v838, 1
      %v1289 = vsel %vm903, %v1287, %v1288
      %v1290 = vrot.slane %v886, 1
      %v1291 = vsel %vm903, %v1288, %v1290
      %1292 = vrot.lane.b32.xlu0 %v916, 28
      %v1293 = vpop.permute.xlu0 %1292
      %1294 = vrot.lane.b32.xlu0 %v918, 28
      %v1295 = vpop.permute.xlu0 %1294
      %1296 = vrot.lane.b32.xlu0 %v921, 28
      %v1297 = vpop.permute.xlu0 %1296
      %1298 = vrot.lane.b32.xlu0 %v923, 28
      %v1299 = vpop.permute.xlu0 %1298
      %1300 = vrot.lane.b32.xlu0 %v926, 28
      %v1301 = vpop.permute.xlu0 %1300
      %1302 = vrot.lane.b32.xlu0 %v928, 28
      %v1303 = vpop.permute.xlu0 %1302
      %1304 = vrot.lane.b32.xlu0 %v931, 28
      %v1305 = vpop.permute.xlu0 %1304
      %1306 = vrot.lane.b32.xlu0 %v933, 28
      %v1307 = vpop.permute.xlu0 %1306
      %1308 = vrot.lane.b32.xlu0 %v936, 28
      %v1309 = vpop.permute.xlu0 %1308
      %1310 = vrot.lane.b32.xlu0 %v938, 28
      %v1311 = vpop.permute.xlu0 %1310
      %1312 = vrot.lane.b32.xlu0 %v941, 28
      %v1313 = vpop.permute.xlu0 %1312
      %1314 = vrot.lane.b32.xlu0 %v943, 28
      %v1315 = vpop.permute.xlu0 %1314
      %1316 = vrot.lane.b32.xlu0 %v1133, 28
      %v1317 = vpop.permute.xlu0 %1316
      %1318 = vrot.lane.b32.xlu0 %v1135, 28
      %v1319 = vpop.permute.xlu0 %1318
      %1320 = vrot.lane.b32.xlu0 %v1289, 28
      %v1321 = vpop.permute.xlu0 %1320
      %1322 = vrot.lane.b32.xlu0 %v1291, 28
      %v1323 = vpop.permute.xlu0 %1322
      %v1340 = vrot.slane %v876, 2
      %v1341 = vrot.slane %v838, 2
      %v1342 = vsel %vm992, %v1340, %v1341
      %v1343 = vrot.slane %v886, 2
      %v1344 = vsel %vm992, %v1341, %v1343
      %1345 = vrot.lane.b32.xlu0 %v1005, 32
      %v1346 = vpop.permute.xlu0 %1345
      %1347 = vrot.lane.b32.xlu0 %v1007, 32
      %v1348 = vpop.permute.xlu0 %1347
      %1349 = vrot.lane.b32.xlu0 %v1010, 32
      %v1350 = vpop.permute.xlu0 %1349
      %1351 = vrot.lane.b32.xlu0 %v1012, 32
      %v1352 = vpop.permute.xlu0 %1351
      %1353 = vrot.lane.b32.xlu0 %v1015, 32
      %v1354 = vpop.permute.xlu0 %1353
      %1355 = vrot.lane.b32.xlu0 %v1017, 32
      %v1356 = vpop.permute.xlu0 %1355
      %1357 = vrot.lane.b32.xlu0 %v1020, 32
      %v1358 = vpop.permute.xlu0 %1357
      %1359 = vrot.lane.b32.xlu0 %v1022, 32
      %v1360 = vpop.permute.xlu0 %1359
      %1361 = vrot.lane.b32.xlu0 %v1025, 32
      %v1362 = vpop.permute.xlu0 %1361
      %1363 = vrot.lane.b32.xlu0 %v1027, 32
      %v1364 = vpop.permute.xlu0 %1363
      %1365 = vrot.lane.b32.xlu0 %v1030, 32
      %v1366 = vpop.permute.xlu0 %1365
      %1367 = vrot.lane.b32.xlu0 %v1032, 32
      %v1368 = vpop.permute.xlu0 %1367
      %1369 = vrot.lane.b32.xlu0 %v1186, 32
      %v1370 = vpop.permute.xlu0 %1369
      %1371 = vrot.lane.b32.xlu0 %v1188, 32
      %v1372 = vpop.permute.xlu0 %1371
      %1373 = vrot.lane.b32.xlu0 %v1342, 32
      %v1374 = vpop.permute.xlu0 %1373
      %1375 = vrot.lane.b32.xlu0 %v1344, 32
      %v1376 = vpop.permute.xlu0 %1375
      %vm1393 = vcmask 31744
      %v1394 = vsel %vm1393, %v867, %v945
      %v1395 = vsel %vm1393, %v811, %v947
      %v1396 = vsel %vm1393, %v868, %v949
      %v1397 = vsel %vm1393, %v814, %v951
      %v1398 = vsel %vm1393, %v869, %v953
      %v1399 = vsel %vm1393, %v817, %v955
      %v1400 = vsel %vm1393, %v870, %v957
      %v1401 = vsel %vm1393, %v820, %v959
      %v1402 = vsel %vm1393, %v871, %v961
      %v1403 = vsel %vm1393, %v823, %v963
      %v1404 = vsel %vm1393, %v872, %v965
      %v1405 = vsel %vm1393, %v826, %v967
      %v1406 = vsel %vm1393, %v873, %v969
      %v1407 = vsel %vm1393, %v829, %v971
      %v1408 = vsel %vm1393, %v874, %v973
      %v1409 = vsel %vm1393, %v832, %v975
      %vm1410 = vcmask 64512
      %v1411 = vsel %vm1410, %v1394, %v1034
      %v1412 = vsel %vm1410, %v1395, %v1036
      %v1413 = vsel %vm1410, %v1396, %v1038
      %v1414 = vsel %vm1410, %v1397, %v1040
      %v1415 = vsel %vm1410, %v1398, %v1042
      %v1416 = vsel %vm1410, %v1399, %v1044
      %v1417 = vsel %vm1410, %v1400, %v1046
      %v1418 = vsel %vm1410, %v1401, %v1048
      %v1419 = vsel %vm1410, %v1402, %v1050
      %v1420 = vsel %vm1410, %v1403, %v1052
      %v1421 = vsel %vm1410, %v1404, %v1054
      %v1422 = vsel %vm1410, %v1405, %v1056
      %v1423 = vsel %vm1410, %v1406, %v1058
      %v1424 = vsel %vm1410, %v1407, %v1060
      %v1425 = vsel %vm1410, %v1408, %v1062
      %v1426 = vsel %vm1410, %v1409, %v1064
      %vm1427 = vcmask 97280
      %v1428 = vsel %vm1427, %v1411, %v1083
      %v1429 = vsel %vm1427, %v1412, %v1085
      %v1430 = vsel %vm1427, %v1413, %v1087
      %v1431 = vsel %vm1427, %v1414, %v1089
      %v1432 = vsel %vm1427, %v1415, %v1091
      %v1433 = vsel %vm1427, %v1416, %v1093
      %v1434 = vsel %vm1427, %v1417, %v1095
      %v1435 = vsel %vm1427, %v1418, %v1097
      %v1436 = vsel %vm1427, %v1419, %v1099
      %v1437 = vsel %vm1427, %v1420, %v1101
      %v1438 = vsel %vm1427, %v1421, %v1103
      %v1439 = vsel %vm1427, %v1422, %v1105
      %v1440 = vsel %vm1427, %v1423, %v1107
      %v1441 = vsel %vm1427, %v1424, %v1109
      %v1442 = vsel %vm1427, %v1425, %v1111
      %v1443 = vsel %vm1427, %v1426, %v1113
      %v1444 = vsel %vm530, %v1428, %v1137
      %v1445 = vsel %vm530, %v1429, %v1139
      %v1446 = vsel %vm530, %v1430, %v1141
      %v1447 = vsel %vm530, %v1431, %v1143
      %v1448 = vsel %vm530, %v1432, %v1145
      %v1449 = vsel %vm530, %v1433, %v1147
      %v1450 = vsel %vm530, %v1434, %v1149
      %v1451 = vsel %vm530, %v1435, %v1151
      %v1452 = vsel %vm530, %v1436, %v1153
      %v1453 = vsel %vm530, %v1437, %v1155
      %v1454 = vsel %vm530, %v1438, %v1157
      %v1455 = vsel %vm530, %v1439, %v1159
      %v1456 = vsel %vm530, %v1440, %v1161
      %v1457 = vsel %vm530, %v1441, %v1163
      %v1458 = vsel %vm530, %v1442, %v1165
      %v1459 = vsel %vm530, %v1443, %v1167
      %vm1460 = vcmask 162816
      %v1461 = vsel %vm1460, %v1444, %v1190
      %v1462 = vsel %vm1460, %v1445, %v1192
      %v1463 = vsel %vm1460, %v1446, %v1194
      %v1464 = vsel %vm1460, %v1447, %v1196
      %v1465 = vsel %vm1460, %v1448, %v1198
      %v1466 = vsel %vm1460, %v1449, %v1200
      %v1467 = vsel %vm1460, %v1450, %v1202
      %v1468 = vsel %vm1460, %v1451, %v1204
      %v1469 = vsel %vm1460, %v1452, %v1206
      %v1470 = vsel %vm1460, %v1453, %v1208
      %v1471 = vsel %vm1460, %v1454, %v1210
      %v1472 = vsel %vm1460, %v1455, %v1212
      %v1473 = vsel %vm1460, %v1456, %v1214
      %v1474 = vsel %vm1460, %v1457, %v1216
      %v1475 = vsel %vm1460, %v1458, %v1218
      %v1476 = vsel %vm1460, %v1459, %v1220
      %vm1477 = vcmask 195584
      %v1478 = vsel %vm1477, %v1461, %v1239
      %v1479 = vsel %vm1477, %v1462, %v1241
      %v1480 = vsel %vm1477, %v1463, %v1243
      %v1481 = vsel %vm1477, %v1464, %v1245
      %v1482 = vsel %vm1477, %v1465, %v1247
      %v1483 = vsel %vm1477, %v1466, %v1249
      %v1484 = vsel %vm1477, %v1467, %v1251
      %v1485 = vsel %vm1477, %v1468, %v1253
      %v1486 = vsel %vm1477, %v1469, %v1255
      %v1487 = vsel %vm1477, %v1470, %v1257
      %v1488 = vsel %vm1477, %v1471, %v1259
      %v1489 = vsel %vm1477, %v1472, %v1261
      %v1490 = vsel %vm1477, %v1473, %v1263
      %v1491 = vsel %vm1477, %v1474, %v1265
      %v1492 = vsel %vm1477, %v1475, %v1267
      %v1493 = vsel %vm1477, %v1476, %v1269
      %vm1494 = vcmask 228352
      %v1495 = vsel %vm1494, %v1478, %v1293
      %v1496 = vsel %vm1494, %v1479, %v1295
      %v1497 = vsel %vm1494, %v1480, %v1297
      %v1498 = vsel %vm1494, %v1481, %v1299
      %v1499 = vsel %vm1494, %v1482, %v1301
      %v1500 = vsel %vm1494, %v1483, %v1303
      %v1501 = vsel %vm1494, %v1484, %v1305
      %v1502 = vsel %vm1494, %v1485, %v1307
      %v1503 = vsel %vm1494, %v1486, %v1309
      %v1504 = vsel %vm1494, %v1487, %v1311
      %v1505 = vsel %vm1494, %v1488, %v1313
      %v1506 = vsel %vm1494, %v1489, %v1315
      %v1507 = vsel %vm1494, %v1490, %v1317
      %v1508 = vsel %vm1494, %v1491, %v1319
      %v1509 = vsel %vm1494, %v1492, %v1321
      %v1510 = vsel %vm1494, %v1493, %v1323
      %vm1511 = vcmask 261120
      %v1512 = vsel %vm1511, %v1495, %v1346
      %v1513 = vsel %vm1511, %v1496, %v1348
      %v1514 = vsel %vm1511, %v1497, %v1350
      %v1515 = vsel %vm1511, %v1498, %v1352
      %v1516 = vsel %vm1511, %v1499, %v1354
      %v1517 = vsel %vm1511, %v1500, %v1356
      %v1518 = vsel %vm1511, %v1501, %v1358
      %v1519 = vsel %vm1511, %v1502, %v1360
      %v1520 = vsel %vm1511, %v1503, %v1362
      %v1521 = vsel %vm1511, %v1504, %v1364
      %v1522 = vsel %vm1511, %v1505, %v1366
      %v1523 = vsel %vm1511, %v1506, %v1368
      %v1524 = vsel %vm1511, %v1507, %v1370
      %v1525 = vsel %vm1511, %v1508, %v1372
      %v1526 = vsel %vm1511, %v1509, %v1374
      %v1527 = vsel %vm1511, %v1510, %v1376
      %v1528 = vld [vmem:[%s5] sm:$0xff]
      %v1529 = vld [vmem:[%s5 + $0x8] sm:$0xff]
      %v1530 = vld [vmem:[%s5 + $0x10] sm:$0xff]
      %v1531 = vld [vmem:[%s5 + $0x18] sm:$0xff]
      %v1532 = vld [vmem:[%s5 + $0x20] sm:$0xf]
      %v1533 = vld [vmem:[%s6] sm:$0x1]
      %v1535 = vlaneseq
      %v1536 = vshrl.u32 %v1535, 7
      %v1537 = vsub.s32 0, %v1536
      %v1538 = vrot.slane %v1533, %v1537
      %vm1540 = vcmask 293888
      %v1542 = vsel %vm1540, %v1512, 0
      %v1545 = vsel %vm1540, %v1513, 0
      %v1548 = vsel %vm1540, %v1514, 0
      %v1551 = vsel %vm1540, %v1515, 0
      %v1554 = vsel %vm1540, %v1516, 0
      %v1557 = vsel %vm1540, %v1517, 0
      %v1560 = vsel %vm1540, %v1518, 0
      %v1563 = vsel %vm1540, %v1519, 0
      %v1566 = vsel %vm1540, %v1520, 0
      %v1569 = vsel %vm1540, %v1521, 0
      %v1572 = vsel %vm1540, %v1522, 0
      %v1575 = vsel %vm1540, %v1523, 0
      %v1578 = vsel %vm1540, %v1524, 0
      %v1581 = vsel %vm1540, %v1525, 0
      %v1584 = vsel %vm1540, %v1526, 0
      %v1587 = vsel %vm1540, %v1527, 0
      %vm1589 = vcmask 1043456
      %v1591 = vsel %vm1589, %v1532, 0
      %1593 = vmatprep.subr.mxu0 0.0
      %1594 = vmatpush1.msra.mxu0 %v1528
      %1595 = vmatprep.subr.mxu0 0.0
      %1596 = vmatpush1.msra.mxu0 %v1529
      %1597 = vmatprep.subr.mxu0 0.0
      %1598 = vmatpush1.msra.mxu0 %v1530
      %1599 = vmatprep.subr.mxu0 0.0
      %1600 = vmatpush1.msra.mxu0 %v1531
      %1601 = vmatprep.subr.mxu0 0.0
      %1602 = vmatpush1.msra.mxu0 %v1591
      %1603 = vmatprep.subr.mxu0 0.0
      %1604 = vmatpush1.msra.mxu0 0.0
      %1605 = vmatprep.subr.mxu0 0.0
      %1606 = vmatpush1.msra.mxu0 0.0
      %1607 = vmatprep.subr.mxu0 0.0
      %1608 = vmatpush1.msra.mxu0 0.0
      %1609 = vmatprep.subr.mxu0 0.0
      %1610 = vmatpush1.msra.mxu0 0.0
      %1611 = vmatprep.subr.mxu0 0.0
      %1612 = vmatpush1.msra.mxu0 0.0
      %1613 = vmatprep.subr.mxu0 0.0
      %1614 = vmatpush1.msra.mxu0 0.0
      %1615 = vmatprep.subr.mxu0 0.0
      %1616 = vmatpush1.msra.mxu0 0.0
      %1617 = vmatprep.subr.mxu0 0.0
      %1618 = vmatpush1.msra.mxu0 0.0
      %1619 = vmatprep.subr.mxu0 0.0
      %1620 = vmatpush1.msra.mxu0 0.0
      %1621 = vmatprep.subr.mxu0 0.0
      %1622 = vmatpush1.msra.mxu0 0.0
      %1623 = vmatprep.subr.mxu0 0.0
      %1624 = vmatpush1.msra.mxu0 0.0
      %1625 = vmatprep.subr.mxu0 0.0
      %1626 = vmatpush1.msra.mxu0 0.0
      %1627 = vmatprep.subr.mxu0 0.0
      %1628 = vmatpush1.msra.mxu0 0.0
      %1629 = vmatprep.subr.mxu0 0.0
      %1630 = vmatpush1.msra.mxu0 0.0
      %1631 = vmatprep.subr.mxu0 0.0
      %1632 = vmatpush1.msra.mxu0 0.0
      %1633 = vmatprep.subr.mxu0 0.0
      %1634 = vmatpush1.msra.mxu0 0.0
      %1635 = vmatprep.subr.mxu0 0.0
      %1636 = vmatpush1.msra.mxu0 0.0
      %1637 = vmatprep.subr.mxu0 0.0
      %1638 = vmatpush1.msra.mxu0 0.0
      %1639 = vmatprep.subr.mxu0 0.0
      %1640 = vmatpush1.msra.mxu0 0.0
      %1641 = vmatprep.subr.mxu0 0.0
      %1642 = vmatpush1.msra.mxu0 0.0
      %1643 = vmatprep.subr.mxu0 0.0
      %1644 = vmatpush1.msra.mxu0 0.0
      %1645 = vmatprep.subr.mxu0 0.0
      %1646 = vmatpush1.msra.mxu0 0.0
      %1647 = vmatprep.subr.mxu0 0.0
      %1648 = vmatpush1.msra.mxu0 0.0
      %1649 = vmatprep.subr.mxu0 0.0
      %1650 = vmatpush1.msra.mxu0 0.0
      %1651 = vmatprep.subr.mxu0 0.0
      %1652 = vmatpush1.msra.mxu0 0.0
      %1653 = vmatprep.subr.mxu0 0.0
      %1654 = vmatpush1.msra.mxu0 0.0
      %1655 = vmatprep.subr.mxu0 0.0
      %1656 = vmatpush1.msra.mxu0 0.0
      %1657 = vmatprep.mubr.f32.mxu0 0.0
      %1658 = vmatmul.mubr.f32.gmra.mrb[0].mxu0 %v1542
      %v1659 = vpop.f32.mrb[0].mxu0
      %v1660 = vadd.f32 %v1538, %v1659
      %v1661 = vpop.f32.mrb[0].mxu0
      %1662 = vmatprep.mubr.f32.mxu0 0.0
      %1663 = vmatmul.mubr.f32.gmra.mrb[0].mxu0 %v1545
      %v1664 = vpop.f32.mrb[0].mxu0
      %v1665 = vadd.f32 %v1538, %v1664
      %v1666 = vpop.f32.mrb[0].mxu0
      %1667 = vmatprep.mubr.f32.mxu0 0.0
      %1668 = vmatmul.mubr.f32.gmra.mrb[0].mxu0 %v1548
      %v1669 = vpop.f32.mrb[0].mxu0
      %v1670 = vadd.f32 %v1538, %v1669
      %v1671 = vpop.f32.mrb[0].mxu0
      %1672 = vmatprep.mubr.f32.mxu0 0.0
      %1673 = vmatmul.mubr.f32.gmra.mrb[0].mxu0 %v1551
      %v1674 = vpop.f32.mrb[0].mxu0
      %v1675 = vadd.f32 %v1538, %v1674
      %v1676 = vpop.f32.mrb[0].mxu0
      %1677 = vmatprep.mubr.f32.mxu0 0.0
      %1678 = vmatmul.mubr.f32.gmra.mrb[0].mxu0 %v1554
      %v1679 = vpop.f32.mrb[0].mxu0
      %v1680 = vadd.f32 %v1538, %v1679
      %v1681 = vpop.f32.mrb[0].mxu0
      %1682 = vmatprep.mubr.f32.mxu0 0.0
      %1683 = vmatmul.mubr.f32.gmra.mrb[0].mxu0 %v1557
      %v1684 = vpop.f32.mrb[0].mxu0
      %v1685 = vadd.f32 %v1538, %v1684
      %v1686 = vpop.f32.mrb[0].mxu0
      %1687 = vmatprep.mubr.f32.mxu0 0.0
      %1688 = vmatmul.mubr.f32.gmra.mrb[0].mxu0 %v1560
      %v1689 = vpop.f32.mrb[0].mxu0
      %v1690 = vadd.f32 %v1538, %v1689
      %v1691 = vpop.f32.mrb[0].mxu0
      %1692 = vmatprep.mubr.f32.mxu0 0.0
      %1693 = vmatmul.mubr.f32.gmra.mrb[0].mxu0 %v1563
      %v1694 = vpop.f32.mrb[0].mxu0
      %v1695 = vadd.f32 %v1538, %v1694
      %v1696 = vpop.f32.mrb[0].mxu0
      %1697 = vmatprep.mubr.f32.mxu0 0.0
      %1698 = vmatmul.mubr.f32.gmra.mrb[0].mxu0 %v1566
      %v1699 = vpop.f32.mrb[0].mxu0
      %v1700 = vadd.f32 %v1538, %v1699
      %v1701 = vpop.f32.mrb[0].mxu0
      %1702 = vmatprep.mubr.f32.mxu0 0.0
      %1703 = vmatmul.mubr.f32.gmra.mrb[0].mxu0 %v1569
      %v1704 = vpop.f32.mrb[0].mxu0
      %v1705 = vadd.f32 %v1538, %v1704
      %v1706 = vpop.f32.mrb[0].mxu0
      %1707 = vmatprep.mubr.f32.mxu0 0.0
      %1708 = vmatmul.mubr.f32.gmra.mrb[0].mxu0 %v1572
      %v1709 = vpop.f32.mrb[0].mxu0
      %v1710 = vadd.f32 %v1538, %v1709
      %v1711 = vpop.f32.mrb[0].mxu0
      %1712 = vmatprep.mubr.f32.mxu0 0.0
      %1713 = vmatmul.mubr.f32.gmra.mrb[0].mxu0 %v1575
      %v1714 = vpop.f32.mrb[0].mxu0
      %v1715 = vadd.f32 %v1538, %v1714
      %v1716 = vpop.f32.mrb[0].mxu0
      %1717 = vmatprep.mubr.f32.mxu0 0.0
      %1718 = vmatmul.mubr.f32.gmra.mrb[0].mxu0 %v1578
      %v1719 = vpop.f32.mrb[0].mxu0
      %v1720 = vadd.f32 %v1538, %v1719
      %v1721 = vpop.f32.mrb[0].mxu0
      %1722 = vmatprep.mubr.f32.mxu0 0.0
      %1723 = vmatmul.mubr.f32.gmra.mrb[0].mxu0 %v1581
      %v1724 = vpop.f32.mrb[0].mxu0
      %v1725 = vadd.f32 %v1538, %v1724
      %v1726 = vpop.f32.mrb[0].mxu0
      %1727 = vmatprep.mubr.f32.mxu0 0.0
      %1728 = vmatmul.mubr.f32.gmra.mrb[0].mxu0 %v1584
      %v1729 = vpop.f32.mrb[0].mxu0
      %v1730 = vadd.f32 %v1538, %v1729
      %v1731 = vpop.f32.mrb[0].mxu0
      %1732 = vmatprep.mubr.f32.mxu0 0.0
      %1733 = vmatmul.mubr.f32.gmra.mrb[0].mxu0 %v1587
      %v1734 = vpop.f32.mrb[0].mxu0
      %v1735 = vadd.f32 %v1538, %v1734
      %v1736 = vpop.f32.mrb[0].mxu0
      %1737 = vdwg.mxu0
      %v1738 = vmax.f32 %v1660, 0.0
      %v1739 = vmax.f32 %v1665, 0.0
      %v1740 = vmax.f32 %v1670, 0.0
      %v1741 = vmax.f32 %v1675, 0.0
      %v1742 = vmax.f32 %v1680, 0.0
      %v1743 = vmax.f32 %v1685, 0.0
      %v1744 = vmax.f32 %v1690, 0.0
      %v1745 = vmax.f32 %v1695, 0.0
      %v1746 = vmax.f32 %v1700, 0.0
      %v1747 = vmax.f32 %v1705, 0.0
      %v1748 = vmax.f32 %v1710, 0.0
      %v1749 = vmax.f32 %v1715, 0.0
      %v1750 = vmax.f32 %v1720, 0.0
      %v1751 = vmax.f32 %v1725, 0.0
      %v1752 = vmax.f32 %v1730, 0.0
      %v1753 = vmax.f32 %v1735, 0.0
      %v1754 = vld [vmem:[%s7] sm:$0xf]
      %v1755 = vld [vmem:[%s8] sm:$0x1]
      %v1757 = vlaneseq
      %v1758 = vshrl.u32 %v1757, 7
      %v1759 = vsub.s32 0, %v1758
      %v1760 = vrot.slane %v1755, %v1759
      %v1763 = vsel %vm1393, %v1738, 0
      %v1766 = vsel %vm1393, %v1739, 0
      %v1769 = vsel %vm1393, %v1740, 0
      %v1772 = vsel %vm1393, %v1741, 0
      %v1775 = vsel %vm1393, %v1742, 0
      %v1778 = vsel %vm1393, %v1743, 0
      %v1781 = vsel %vm1393, %v1744, 0
      %v1784 = vsel %vm1393, %v1745, 0
      %v1787 = vsel %vm1393, %v1746, 0
      %v1790 = vsel %vm1393, %v1747, 0
      %v1793 = vsel %vm1393, %v1748, 0
      %v1796 = vsel %vm1393, %v1749, 0
      %v1799 = vsel %vm1393, %v1750, 0
      %v1802 = vsel %vm1393, %v1751, 0
      %v1805 = vsel %vm1393, %v1752, 0
      %v1808 = vsel %vm1393, %v1753, 0
      %v1811 = vsel %vm1589, %v1754, 0
      %1813 = vmatprep.subr.mxu0 0.0
      %1814 = vmatpush1.msra.mxu0 %v1811
      %1815 = vmatprep.subr.mxu0 0.0
      %1816 = vmatpush1.msra.mxu0 0.0
      %1817 = vmatprep.subr.mxu0 0.0
      %1818 = vmatpush1.msra.mxu0 0.0
      %1819 = vmatprep.subr.mxu0 0.0
      %1820 = vmatpush1.msra.mxu0 0.0
      %1821 = vmatprep.subr.mxu0 0.0
      %1822 = vmatpush1.msra.mxu0 0.0
      %1823 = vmatprep.subr.mxu0 0.0
      %1824 = vmatpush1.msra.mxu0 0.0
      %1825 = vmatprep.subr.mxu0 0.0
      %1826 = vmatpush1.msra.mxu0 0.0
      %1827 = vmatprep.subr.mxu0 0.0
      %1828 = vmatpush1.msra.mxu0 0.0
      %1829 = vmatprep.subr.mxu0 0.0
      %1830 = vmatpush1.msra.mxu0 0.0
      %1831 = vmatprep.subr.mxu0 0.0
      %1832 = vmatpush1.msra.mxu0 0.0
      %1833 = vmatprep.subr.mxu0 0.0
      %1834 = vmatpush1.msra.mxu0 0.0
      %1835 = vmatprep.subr.mxu0 0.0
      %1836 = vmatpush1.msra.mxu0 0.0
      %1837 = vmatprep.subr.mxu0 0.0
      %1838 = vmatpush1.msra.mxu0 0.0
      %1839 = vmatprep.subr.mxu0 0.0
      %1840 = vmatpush1.msra.mxu0 0.0
      %1841 = vmatprep.subr.mxu0 0.0
      %1842 = vmatpush1.msra.mxu0 0.0
      %1843 = vmatprep.subr.mxu0 0.0
      %1844 = vmatpush1.msra.mxu0 0.0
      %1845 = vmatprep.subr.mxu0 0.0
      %1846 = vmatpush1.msra.mxu0 0.0
      %1847 = vmatprep.subr.mxu0 0.0
      %1848 = vmatpush1.msra.mxu0 0.0
      %1849 = vmatprep.subr.mxu0 0.0
      %1850 = vmatpush1.msra.mxu0 0.0
      %1851 = vmatprep.subr.mxu0 0.0
      %1852 = vmatpush1.msra.mxu0 0.0
      %1853 = vmatprep.subr.mxu0 0.0
      %1854 = vmatpush1.msra.mxu0 0.0
      %1855 = vmatprep.subr.mxu0 0.0
      %1856 = vmatpush1.msra.mxu0 0.0
      %1857 = vmatprep.subr.mxu0 0.0
      %1858 = vmatpush1.msra.mxu0 0.0
      %1859 = vmatprep.subr.mxu0 0.0
      %1860 = vmatpush1.msra.mxu0 0.0
      %1861 = vmatprep.subr.mxu0 0.0
      %1862 = vmatpush1.msra.mxu0 0.0
      %1863 = vmatprep.subr.mxu0 0.0
      %1864 = vmatpush1.msra.mxu0 0.0
      %1865 = vmatprep.subr.mxu0 0.0
      %1866 = vmatpush1.msra.mxu0 0.0
      %1867 = vmatprep.subr.mxu0 0.0
      %1868 = vmatpush1.msra.mxu0 0.0
      %1869 = vmatprep.subr.mxu0 0.0
      %1870 = vmatpush1.msra.mxu0 0.0
      %1871 = vmatprep.subr.mxu0 0.0
      %1872 = vmatpush1.msra.mxu0 0.0
      %1873 = vmatprep.subr.mxu0 0.0
      %1874 = vmatpush1.msra.mxu0 0.0
      %1875 = vmatprep.subr.mxu0 0.0
      %1876 = vmatpush1.msra.mxu0 0.0
      %1877 = vmatprep.mubr.f32.mxu0 0.0
      %1878 = vmatmul.mubr.f32.gmra.mrb[0].mxu0 %v1763
      %v1879 = vpop.f32.mrb[0].mxu0
      %v1880 = vadd.f32 %v1760, %v1879
      %v1881 = vpop.f32.mrb[0].mxu0
      %1882 = vmatprep.mubr.f32.mxu0 0.0
      %1883 = vmatmul.mubr.f32.gmra.mrb[0].mxu0 %v1766
      %v1884 = vpop.f32.mrb[0].mxu0
      %v1885 = vadd.f32 %v1760, %v1884
      %v1886 = vpop.f32.mrb[0].mxu0
      %1887 = vmatprep.mubr.f32.mxu0 0.0
      %1888 = vmatmul.mubr.f32.gmra.mrb[0].mxu0 %v1769
      %v1889 = vpop.f32.mrb[0].mxu0
      %v1890 = vadd.f32 %v1760, %v1889
      %v1891 = vpop.f32.mrb[0].mxu0
      %1892 = vmatprep.mubr.f32.mxu0 0.0
      %1893 = vmatmul.mubr.f32.gmra.mrb[0].mxu0 %v1772
      %v1894 = vpop.f32.mrb[0].mxu0
      %v1895 = vadd.f32 %v1760, %v1894
      %v1896 = vpop.f32.mrb[0].mxu0
      %1897 = vmatprep.mubr.f32.mxu0 0.0
      %1898 = vmatmul.mubr.f32.gmra.mrb[0].mxu0 %v1775
      %v1899 = vpop.f32.mrb[0].mxu0
      %v1900 = vadd.f32 %v1760, %v1899
      %v1901 = vpop.f32.mrb[0].mxu0
      %1902 = vmatprep.mubr.f32.mxu0 0.0
      %1903 = vmatmul.mubr.f32.gmra.mrb[0].mxu0 %v1778
      %v1904 = vpop.f32.mrb[0].mxu0
      %v1905 = vadd.f32 %v1760, %v1904
      %v1906 = vpop.f32.mrb[0].mxu0
      %1907 = vmatprep.mubr.f32.mxu0 0.0
      %1908 = vmatmul.mubr.f32.gmra.mrb[0].mxu0 %v1781
      %v1909 = vpop.f32.mrb[0].mxu0
      %v1910 = vadd.f32 %v1760, %v1909
      %v1911 = vpop.f32.mrb[0].mxu0
      %1912 = vmatprep.mubr.f32.mxu0 0.0
      %1913 = vmatmul.mubr.f32.gmra.mrb[0].mxu0 %v1784
      %v1914 = vpop.f32.mrb[0].mxu0
      %v1915 = vadd.f32 %v1760, %v1914
      %v1916 = vpop.f32.mrb[0].mxu0
      %1917 = vmatprep.mubr.f32.mxu0 0.0
      %1918 = vmatmul.mubr.f32.gmra.mrb[0].mxu0 %v1787
      %v1919 = vpop.f32.mrb[0].mxu0
      %v1920 = vadd.f32 %v1760, %v1919
      %v1921 = vpop.f32.mrb[0].mxu0
      %1922 = vmatprep.mubr.f32.mxu0 0.0
      %1923 = vmatmul.mubr.f32.gmra.mrb[0].mxu0 %v1790
      %v1924 = vpop.f32.mrb[0].mxu0
      %v1925 = vadd.f32 %v1760, %v1924
      %v1926 = vpop.f32.mrb[0].mxu0
      %1927 = vmatprep.mubr.f32.mxu0 0.0
      %1928 = vmatmul.mubr.f32.gmra.mrb[0].mxu0 %v1793
      %v1929 = vpop.f32.mrb[0].mxu0
      %v1930 = vadd.f32 %v1760, %v1929
      %v1931 = vpop.f32.mrb[0].mxu0
      %1932 = vmatprep.mubr.f32.mxu0 0.0
      %1933 = vmatmul.mubr.f32.gmra.mrb[0].mxu0 %v1796
      %v1934 = vpop.f32.mrb[0].mxu0
      %v1935 = vadd.f32 %v1760, %v1934
      %v1936 = vpop.f32.mrb[0].mxu0
      %1937 = vmatprep.mubr.f32.mxu0 0.0
      %1938 = vmatmul.mubr.f32.gmra.mrb[0].mxu0 %v1799
      %v1939 = vpop.f32.mrb[0].mxu0
      %v1940 = vadd.f32 %v1760, %v1939
      %v1941 = vpop.f32.mrb[0].mxu0
      %1942 = vmatprep.mubr.f32.mxu0 0.0
      %1943 = vmatmul.mubr.f32.gmra.mrb[0].mxu0 %v1802
      %v1944 = vpop.f32.mrb[0].mxu0
      %v1945 = vadd.f32 %v1760, %v1944
      %v1946 = vpop.f32.mrb[0].mxu0
      %1947 = vmatprep.mubr.f32.mxu0 0.0
      %1948 = vmatmul.mubr.f32.gmra.mrb[0].mxu0 %v1805
      %v1949 = vpop.f32.mrb[0].mxu0
      %v1950 = vadd.f32 %v1760, %v1949
      %v1951 = vpop.f32.mrb[0].mxu0
      %1952 = vmatprep.mubr.f32.mxu0 0.0
      %1953 = vmatmul.mubr.f32.gmra.mrb[0].mxu0 %v1808
      %v1954 = vpop.f32.mrb[0].mxu0
      %v1955 = vadd.f32 %v1760, %v1954
      %v1956 = vpop.f32.mrb[0].mxu0
      %1957 = vdwg.mxu0
      %v1958 = vadd.f32 %v1880, %v501
      %v1959 = vadd.f32 %v1885, %v502
      %v1960 = vadd.f32 %v1890, %v503
      %v1961 = vadd.f32 %v1895, %v504
      %v1962 = vadd.f32 %v1900, %v505
      %v1963 = vadd.f32 %v1905, %v506
      %v1964 = vadd.f32 %v1910, %v507
      %v1965 = vadd.f32 %v1915, %v508
      %v1966 = vadd.f32 %v1920, %v509
      %v1967 = vadd.f32 %v1925, %v510
      %v1968 = vadd.f32 %v1930, %v511
      %v1969 = vadd.f32 %v1935, %v512
      %v1970 = vadd.f32 %v1940, %v513
      %v1971 = vadd.f32 %v1945, %v514
      %v1972 = vadd.f32 %v1950, %v515
      %v1973 = vadd.f32 %v1955, %v516
      %v1974 = vmax.f32 %v1958, 0.0
      %v1975 = vmax.f32 %v1959, 0.0
      %v1976 = vmax.f32 %v1960, 0.0
      %v1977 = vmax.f32 %v1961, 0.0
      %v1978 = vmax.f32 %v1962, 0.0
      %v1979 = vmax.f32 %v1963, 0.0
      %v1980 = vmax.f32 %v1964, 0.0
      %v1981 = vmax.f32 %v1965, 0.0
      %v1982 = vmax.f32 %v1966, 0.0
      %v1983 = vmax.f32 %v1967, 0.0
      %v1984 = vmax.f32 %v1968, 0.0
      %v1985 = vmax.f32 %v1969, 0.0
      %v1986 = vmax.f32 %v1970, 0.0
      %v1987 = vmax.f32 %v1971, 0.0
      %v1988 = vmax.f32 %v1972, 0.0
      %v1989 = vmax.f32 %v1973, 0.0
      %1990 = vst.msk [vmem:[%s499] sm:$0xff] %vm530, %v1974
      %1991 = vst.msk [vmem:[%s499 + $0x8] sm:$0xff] %vm530, %v1975
      %1992 = vst.msk [vmem:[%s499 + $0x10] sm:$0xff] %vm530, %v1976
      %1993 = vst.msk [vmem:[%s499 + $0x18] sm:$0xff] %vm530, %v1977
      %1994 = vst.msk [vmem:[%s499 + $0x20] sm:$0xff] %vm530, %v1978
      %1995 = vst.msk [vmem:[%s499 + $0x28] sm:$0xff] %vm530, %v1979
      %1996 = vst.msk [vmem:[%s499 + $0x30] sm:$0xff] %vm530, %v1980
      %1997 = vst.msk [vmem:[%s499 + $0x38] sm:$0xff] %vm530, %v1981
      %1998 = vst.msk [vmem:[%s499 + $0x40] sm:$0xff] %vm530, %v1982
      %1999 = vst.msk [vmem:[%s499 + $0x48] sm:$0xff] %vm530, %v1983
      %2000 = vst.msk [vmem:[%s499 + $0x50] sm:$0xff] %vm530, %v1984
      %2001 = vst.msk [vmem:[%s499 + $0x58] sm:$0xff] %vm530, %v1985
      %2002 = vst.msk [vmem:[%s499 + $0x60] sm:$0xff] %vm530, %v1986
      %2003 = vst.msk [vmem:[%s499 + $0x68] sm:$0xff] %vm530, %v1987
      %2004 = vst.msk [vmem:[%s499 + $0x70] sm:$0xff] %vm530, %v1988
      %2005 = vst.msk [vmem:[%s499 + $0x78] sm:$0xff] %vm530, %v1989
      %s2006 = smul.u32 8, %s25
      %p2007 = scmp.lt.s32.totalorder %s24, 1
      %s2008 = scalar_select %p2007, %s24, 1
      %p2009 = scmp.lt.s32.totalorder %s2006, 15
      %s2010 = scalar_select %p2009, %s2006, 15
      %s2011 = smul.addr %s2010, 2
      %s2012 = smul.addr %s2008, 32
      %s2013 = sadd.s32 %s2011, %s2012
      %s2014 = smul.addr %s2013, 8
      %s2015 = scalar_lea.vmem %s9, %s2014
      // Predicated region
      $region57: #{bottleneck_forward.1} parent=55 // pred_check
        %p2016 = pneg %p278
      $region58: #{bottleneck_forward.1} parent=55 // pred_check_branch
        %2018 = sbr.rel (%p2016) target = $region60
      $region59: #{bottleneck_forward.1} parent=55 // pred_region
        %s2019 = smul.u32 8, %s25
      $region60: #{bottleneck_forward.1} parent=55 // pred_fallthru
        _
    $region56: #{bottleneck_forward.1} parent=5 // pred_fallthru
      _
    %p2020 = scmp.le.s32.totalorder 2, %s15
    // Predicated region
    $region61: #{bottleneck_forward.1} parent=5 // pred_check
      %p2021 = pneg %p2020
    $region62: #{bottleneck_forward.1} parent=5 // pred_check_branch
      %2023 = sbr.rel (%p2021) target = $region64
    $region63: #{bottleneck_forward.1} parent=5 // pred_region
      %s2024 = ssub.s32 %s15, 2
      // Predicated region
      $region65: #{bottleneck_forward.1} parent=63 // pred_check
        %p2025 = pneg %p284
      $region66: #{bottleneck_forward.1} parent=63 // pred_check_branch
        %2027 = sbr.rel (%p2025) target = $region68
      $region67: #{bottleneck_forward.1} parent=63 // pred_region
        %s2028 = smul.u32 8, %s27
        %p2029 = scmp.lt.s32.totalorder %s26, 1
        %s2030 = scalar_select %p2029, %s26, 1
        %p2031 = scmp.lt.s32.totalorder %s2028, 15
        %s2032 = scalar_select %p2031, %s2028, 15
        %s2033 = smul.addr %s2032, 2
        %s2034 = smul.addr %s2030, 32
        %s2035 = sadd.s32 %s2033, %s2034
        %s2036 = smul.addr %s2035, 8
        %s2037 = scalar_lea.vmem %s9, %s2036
      $region68: #{bottleneck_forward.1} parent=63 // pred_fallthru
        _
    $region64: #{bottleneck_forward.1} parent=5 // pred_fallthru
      _
  $region6: #{bottleneck_forward.1} parent=0 // loop_footer
    %s19 = sadd.s32 1, %s15
  $region7: #{bottleneck_forward.1} parent=0 // loop_footer_branch
    %14 = sbr.rel target = $region3
  $region8: #{bottleneck_forward.1} parent=0 // loop_exit
    _

</llo_original>
